<compile_context>
chip_gen: v7x
topology: tpu7x:2x2x1
jax: 0.10.0
libtpu: 0.0.40
codegen_flags: <defaults>
</compile_context>

<pallas_src>
import functools
import math

import jax
import jax.numpy as jnp
from jax import lax
from jax.experimental import pallas as pl
from jax.experimental.pallas import tpu as pltpu

TEMPERATURE = 0.0005  # model_config['temperature'] in the reference repo
_NEG_BIG = -1e30      # effective -inf for lane padding (exp underflows to 0)


def _round_up(x, m):
    return ((x + m - 1) // m) * m


def _conv3_cat(x):
    # x: (T, I) -> (T, 3I) = [x_{t-1} | x_t | x_{t+1}] with zero boundary rows, so the
    # kernel_size=3 conv (padding=1) runs as ONE matmul against a (3I, O) weight.
    zero = jnp.zeros((1, x.shape[1]), x.dtype)
    xm = jnp.concatenate([zero, x[:-1, :]], axis=0)   # x[t-1]
    xp = jnp.concatenate([x[1:, :], zero], axis=0)    # x[t+1]
    return jnp.concatenate([xm, x, xp], axis=-1)


def aligner_kernel(keys_ref, queries_ref, prior_ref, logprior_ref, mask_ref,
                   kc1_w, kc1_b, kc2_w, kc2_b,
                   qc1_w, qc1_b, qc2_w, qc2_b, qc3_w, qc3_b,
                   attn_ref, logprob_ref,
                   k_enc_s, nk2_s, q_enc_s, *, t2):
    f32 = jnp.float32
    bf16 = jnp.bfloat16
    tq, t2p = prior_ref.shape[1], prior_ref.shape[2]
    c_attp = k_enc_s.shape[-1]
    j = pl.program_id(1)

    # ---- once per batch element (first T1 tile): encoders -> VMEM scratch ----
    @pl.when(j == 0)
    def _encode():
        # key_proj: conv(k=3) -> ReLU -> conv(k=1)   (bf16 MXU inputs, f32 accumulate)
        keys = keys_ref[0]                                                # (T2p, C_text) bf16
        kh = jnp.dot(_conv3_cat(keys), kc1_w[...],
                     preferred_element_type=f32) + kc1_b[...]
        kh = jnp.maximum(kh, 0.0)
        k_enc = jnp.dot(kh.astype(bf16), kc2_w[...],
                        preferred_element_type=f32) + kc2_b[...]          # (T2p, C_attp) f32
        k_enc_s[...] = k_enc.astype(bf16)
        # -temperature * ||k||^2 as a lane-aligned (1, T2p) row via the MXU, with the T2
        # lane-padding mask folded in ONCE so the per-tile epilogue never re-masks.
        neg_t = jnp.full((1, c_attp), -TEMPERATURE, dtype=f32)
        nk2 = lax.dot_general(neg_t, k_enc * k_enc,
                              (((1,), (1,)), ((), ())),
                              preferred_element_type=f32)                 # (1, T2p)
        lane = lax.broadcasted_iota(jnp.int32, (1, t2p), 1)
        nk2_s[...] = jnp.where(lane < t2, nk2, _NEG_BIG)

        # query_proj: conv(k=3) -> ReLU -> conv(k=1) -> ReLU -> conv(k=1)
        q = queries_ref[0]                                                # (T1p, C_mel) bf16
        qh = jnp.dot(_conv3_cat(q), qc1_w[...],
                     preferred_element_type=f32) + qc1_b[...]
        qh = jnp.maximum(qh, 0.0)
        qh = jnp.dot(qh.astype(bf16), qc2_w[...],
                     preferred_element_type=f32) + qc2_b[...]
        qh = jnp.maximum(qh, 0.0)
        q_enc = jnp.dot(qh.astype(bf16), qc3_w[...],
                        preferred_element_type=f32) + qc3_b[...]          # (T1p, C_attp) f32
        # ||q||^2 is a per-row constant over T2 -> cancels in both softmaxes, dropped.
        # Fold the 2*temperature scale in here once per batch element.
        q_enc_s[...] = ((2.0 * TEMPERATURE) * q_enc).astype(bf16)

    # ---- per T1-tile attention epilogue ----
    row0 = pl.multiple_of(j * tq, tq)
    q_tile = q_enc_s[pl.ds(row0, tq), :]                                  # (tq, C_attp) bf16
    attn = lax.dot_general(q_tile, k_enc_s[...],
                           (((1,), (1,)), ((), ())),
                           preferred_element_type=f32) + nk2_s[...]       # (tq, T2p) f32

    prior = prior_ref[0]                                                  # prior + 1e-8
    logp = logprior_ref[0]                                                # log(prior + 1e-8)
    m = jnp.max(attn, axis=-1, keepdims=True)
    p = jnp.exp(attn - m)                     # single tile-wide transcendental per tile
    s = jnp.sum(p, axis=-1, keepdims=True)
    logprob_ref[0, 0] = attn - (m + jnp.log(s)) + logp

    # masked softmax without a second exp/max pass:
    #   softmax(where(mask, -inf, log_softmax(attn) + log(prior+1e-8)))
    #     == normalize_over_T2( p * (prior + 1e-8) * (1 - mask) )
    # (rows with every T2 position masked give 0 * inf = NaN, same as the PyTorch -inf fill)
    w = p * prior * (1.0 - mask_ref[0])
    attn_ref[0, 0] = w * pl.reciprocal(jnp.sum(w, axis=-1, keepdims=True), approx=True)


def alignment_encoder(queries, keys, mask, attn_prior, g, params, *, tq=256):
    f32 = jnp.float32
    bf16 = jnp.bfloat16
    B, C_mel, T1 = queries.shape
    _, T2, C_text = keys.shape
    C_att = params["kc2_w"].shape[-1]

    # ---- hoisted speaker conditioning (two tiny batched matmuls) ----
    g_row = jnp.transpose(g, (0, 2, 1)).astype(f32)                        # (B, 1, gin)
    spk_k = jnp.einsum("bog,gc->boc", g_row, params["kspk_w"]) + params["kspk_b"]
    spk_q = jnp.einsum("bog,gc->boc", g_row, params["qspk_w"]) + params["qspk_b"]
    keys_c = keys.astype(f32) + spk_k                                      # (B, T2, C_text)
    queries_c = jnp.transpose(queries, (0, 2, 1)).astype(f32) + spk_q      # (B, T1, C_mel)

    # ---- lane-dense / tile padding: T2 -> mult of 128, T1 -> mult of tq (tq mult of 16) ----
    T2p = _round_up(T2, 128)
    tq = max(16, min(_round_up(tq, 16), _round_up(T1, 16)))
    T1p = _round_up(T1, tq)
    n_t1 = T1p // tq

    # zero padding of the (speaker-conditioned) inputs exactly reproduces the conv's
    # zero padding at the true sequence boundary.  bf16 halves the HBM->VMEM DMA.
    keys_p = jnp.pad(keys_c, ((0, 0), (0, T2p - T2), (0, 0))).astype(bf16)
    queries_p = jnp.pad(queries_c, ((0, 0), (0, T1p - T1), (0, 0))).astype(bf16)

    # prior (+1e-8) and its log, precomputed/fused with the transpose+pad pass so the kernel
    # epilogue needs no tile-wide log (single exp per tile on the EUP).
    prior_eps = jnp.transpose(attn_prior, (0, 2, 1)).astype(f32) + 1e-8
    prior_p = jnp.pad(prior_eps, ((0, 0), (0, T1p - T1), (0, T2p - T2)))
    logprior_p = jnp.pad(jnp.log(prior_eps), ((0, 0), (0, T1p - T1), (0, T2p - T2)))
    mask_p = jnp.pad(mask.astype(f32), ((0, 0), (0, T2p - T2)),
                     constant_values=1.0)[:, None, :]                      # (B, 1, T2p)

    # ---- weights: fuse conv3 taps into (3I, O); zero-pad hidden / C_att widths to 128 ----
    H_k = _round_up(2 * C_text, 128)
    H_q1 = _round_up(2 * C_mel, 128)
    H_q2 = _round_up(C_mel, 128)
    C_attp = _round_up(C_att, 128)

    def pad2(w, rows, cols, dt):
        return jnp.pad(w, ((0, rows - w.shape[0]), (0, cols - w.shape[1]))).astype(dt)

    w_args = [
        pad2(params["kc1_w"].reshape(3 * C_text, 2 * C_text), 3 * C_text, H_k, bf16),
        pad2(params["kc1_b"], 1, H_k, f32),
        pad2(params["kc2_w"], H_k, C_attp, bf16),
        pad2(params["kc2_b"], 1, C_attp, f32),
        pad2(params["qc1_w"].reshape(3 * C_mel, 2 * C_mel), 3 * C_mel, H_q1, bf16),
        pad2(params["qc1_b"], 1, H_q1, f32),
        pad2(params["qc2_w"], H_q1, H_q2, bf16),
        pad2(params["qc2_b"], 1, H_q2, f32),
        pad2(params["qc3_w"], H_q2, C_attp, bf16),
        pad2(params["qc3_b"], 1, C_attp, f32),
    ]

    def full_spec(a):
        return pl.BlockSpec(a.shape, lambda b, j, _nd=a.ndim: (0,) * _nd)

    in_specs = [
        pl.BlockSpec((1, T2p, C_text), lambda b, j: (b, 0, 0)),   # keys      (per batch)
        pl.BlockSpec((1, T1p, C_mel), lambda b, j: (b, 0, 0)),    # queries   (per batch)
        pl.BlockSpec((1, tq, T2p), lambda b, j: (b, j, 0)),       # prior+eps (per tile)
        pl.BlockSpec((1, tq, T2p), lambda b, j: (b, j, 0)),       # log prior (per tile)
        pl.BlockSpec((1, 1, T2p), lambda b, j: (b, 0, 0)),        # mask      (per batch)
    ] + [full_spec(w) for w in w_args]

    out_specs = [
        pl.BlockSpec((1, 1, tq, T2p), lambda b, j: (b, 0, j, 0)),
        pl.BlockSpec((1, 1, tq, T2p), lambda b, j: (b, 0, j, 0)),
    ]
    out_shape = [
        jax.ShapeDtypeStruct((B, 1, T1p, T2p), f32),
        jax.ShapeDtypeStruct((B, 1, T1p, T2p), f32),
    ]

    scratch_shapes = [
        pltpu.VMEM((T2p, C_attp), bf16),   # k_enc
        pltpu.VMEM((1, T2p), f32),         # -temperature * ||k||^2 (+ lane mask folded in)
        pltpu.VMEM((T1p, C_attp), bf16),   # 2*temperature * q_enc
    ]

    # ---- explicit VMEM budget: double-buffered blocks + weights + scratch + j==0 temps ----
    def nbytes(shape, dt):
        return math.prod(shape) * jnp.dtype(dt).itemsize
    blk = (nbytes((T2p, C_text), bf16) + nbytes((T1p, C_mel), bf16)
           + 4 * nbytes((tq, T2p), f32)          # prior + logprior in, attn + logprob out
           + nbytes((1, T2p), f32))
    wts = sum(int(x.size) * x.dtype.itemsize for x in w_args)
    scr = (nbytes((T2p, C_attp), bf16) + nbytes((T1p, C_attp), bf16) + nbytes((1, T2p), f32))
    enc_tmp = (nbytes((T2p, 3 * C_text), bf16) + nbytes((T1p, 3 * C_mel), bf16)
               + nbytes((T2p, H_k), f32) + nbytes((T2p, C_attp), f32)
               + nbytes((T1p, H_q1), f32) + nbytes((T1p, H_q2), f32)
               + nbytes((T1p, C_attp), f32))
    est = 2 * (blk + wts) + scr + enc_tmp + (4 << 20)
    vmem_limit = int(min(max(est, 32 << 20), 48 << 20))   # 48 MiB cap keeps v7x (64 MiB) safe

    attn, attn_logprob = pl.pallas_call(
        functools.partial(aligner_kernel, t2=T2),
        grid=(B, n_t1),
        in_specs=in_specs,
        out_specs=out_specs,
        out_shape=out_shape,
        scratch_shapes=scratch_shapes,
        compiler_params=pltpu.CompilerParams(
            dimension_semantics=("parallel", "arbitrary"),
            vmem_limit_bytes=vmem_limit),
    )(keys_p, queries_p, prior_p, logprior_p, mask_p, *w_args)

    # strip lane / tile padding only when padding was actually added (avoids a full
    # read+write of both outputs on already-aligned shapes)
    if T1p != T1 or T2p != T2:
        attn = attn[:, :, :T1, :T2]
        attn_logprob = attn_logprob[:, :, :T1, :T2]
    return attn, attn_logprob


def init_params(key, gin, c_text, c_mel, c_att):
    ks = jax.random.split(key, 14)

    def w(k, shape, scale=0.1):
        return (scale * jax.random.normal(k, shape)).astype(jnp.float32)

    # Conv1d weights stored as (kernel=3, in, out); pointwise convs / Linears as (in, out);
    # biases as (1, out).  Synthetic deterministic init.
    return {
        "kspk_w": w(ks[0], (gin, c_text)),
        "kspk_b": w(ks[1], (1, c_text)),
        "kc1_w": w(ks[2], (3, c_text, 2 * c_text)),
        "kc1_b": w(ks[3], (1, 2 * c_text)),
        "kc2_w": w(ks[4], (2 * c_text, c_att)),
        "kc2_b": w(ks[5], (1, c_att)),
        "qspk_w": w(ks[6], (gin, c_mel)),
        "qspk_b": w(ks[7], (1, c_mel)),
        "qc1_w": w(ks[8], (3, c_mel, 2 * c_mel)),
        "qc1_b": w(ks[9], (1, 2 * c_mel)),
        "qc2_w": w(ks[10], (2 * c_mel, c_mel)),
        "qc2_b": w(ks[11], (1, c_mel)),
        "qc3_w": w(ks[12], (c_mel, c_att)),
        "qc3_b": w(ks[13], (1, c_att)),
    }


def _ref_single(q_t, k, g1, prior_t, mask_row, p):
    # pure-JAX f32 reference, exact PyTorch semantics (broadcasted diff^2 sum)
    def conv3(x, w, b):
        zero = jnp.zeros((1, x.shape[1]), x.dtype)
        xm = jnp.concatenate([zero, x[:-1]], 0)
        xp = jnp.concatenate([x[1:], zero], 0)
        return xm @ w[0] + x @ w[1] + xp @ w[2] + b

    k = k + (g1 @ p["kspk_w"] + p["kspk_b"])
    q = q_t + (g1 @ p["qspk_w"] + p["qspk_b"])
    kh = jax.nn.relu(conv3(k, p["kc1_w"], p["kc1_b"]))
    k_enc = kh @ p["kc2_w"] + p["kc2_b"]
    qh = jax.nn.relu(conv3(q, p["qc1_w"], p["qc1_b"]))
    qh = jax.nn.relu(qh @ p["qc2_w"] + p["qc2_b"])
    q_enc = qh @ p["qc3_w"] + p["qc3_b"]
    dist = jnp.sum((q_enc[:, None, :] - k_enc[None, :, :]) ** 2, axis=-1)
    attn = -TEMPERATURE * dist
    attn = jax.nn.log_softmax(attn, axis=-1) + jnp.log(prior_t + 1e-8)
    logprob = attn
    attn = jnp.where(mask_row[None, :] > 0.5, -jnp.inf, attn)
    attn = jax.nn.softmax(attn, axis=-1)
    return attn[None], logprob[None]


if __name__ == "__main__":
    B, gin = 2, 16
    C_mel, C_text, C_att = 16, 32, 32   # n_mel, encoder_hidden, vp filter_size
    T1, T2 = 24, 8                      # mel frames, text tokens

    key = jax.random.PRNGKey(0)
    kq, kk, kg, kp, kparam = jax.random.split(key, 5)
    queries = jax.random.normal(kq, (B, C_mel, T1), jnp.float32)
    keys = jax.random.normal(kk, (B, T2, C_text), jnp.float32)
    g = jax.random.normal(kg, (B, gin, 1), jnp.float32)
    attn_prior = jax.random.uniform(kp, (B, T2, T1), jnp.float32, 0.05, 1.0)
    lengths = jnp.array([T2, T2 - 3], jnp.int32)
    mask = jnp.arange(T2)[None, :] >= lengths[:, None]   # True == padded

    params = init_params(kparam, gin, C_text, C_mel, C_att)

    attn, attn_logprob = alignment_encoder(queries, keys, mask, attn_prior, g, params)
    jax.block_until_ready((attn, attn_logprob))

    # correctness check against a pure-JAX f32 reference (kernel uses bf16 matmul inputs)
    ref_fn = jax.vmap(lambda qt, k_, g1, pr, m: _ref_single(qt, k_, g1, pr, m, params))
    ref_attn, ref_lp = ref_fn(
        jnp.transpose(queries, (0, 2, 1)), keys, jnp.transpose(g, (0, 2, 1)),
        jnp.transpose(attn_prior, (0, 2, 1)), mask.astype(jnp.float32))
    assert attn.shape == (B, 1, T1, T2) and attn_logprob.shape == (B, 1, T1, T2)
    assert jnp.allclose(attn, ref_attn, atol=2e-3, rtol=2e-3)
    assert jnp.allclose(attn_logprob, ref_lp, atol=2e-3, rtol=2e-3)

    print("KERNEL_OK")
</pallas_src>

<mosaic_0001>
module attributes {stable_mosaic.version = 11 : i64} {
  func.func @aligner_kernel(%arg0: i32, %arg1: i32, %arg2: memref<1x128x32xbf16, #tpu.memory_space<vmem>>, %arg3: memref<1x32x16xbf16, #tpu.memory_space<vmem>>, %arg4: memref<1x32x128xf32, #tpu.memory_space<vmem>>, %arg5: memref<1x32x128xf32, #tpu.memory_space<vmem>>, %arg6: memref<1x1x128xf32, #tpu.memory_space<vmem>>, %arg7: memref<96x128xbf16, #tpu.memory_space<vmem>>, %arg8: memref<1x128xf32, #tpu.memory_space<vmem>>, %arg9: memref<128x128xbf16, #tpu.memory_space<vmem>>, %arg10: memref<1x128xf32, #tpu.memory_space<vmem>>, %arg11: memref<48x128xbf16, #tpu.memory_space<vmem>>, %arg12: memref<1x128xf32, #tpu.memory_space<vmem>>, %arg13: memref<128x128xbf16, #tpu.memory_space<vmem>>, %arg14: memref<1x128xf32, #tpu.memory_space<vmem>>, %arg15: memref<128x128xbf16, #tpu.memory_space<vmem>>, %arg16: memref<1x128xf32, #tpu.memory_space<vmem>>, %arg17: memref<1x1x32x128xf32, #tpu.memory_space<vmem>>, %arg18: memref<1x1x32x128xf32, #tpu.memory_space<vmem>>, %arg19: memref<128x128xbf16, #tpu.memory_space<vmem>>, %arg20: memref<1x128xf32, #tpu.memory_space<vmem>>, %arg21: memref<32x128xbf16, #tpu.memory_space<vmem>>) attributes {dimension_semantics = [#tpu.dimension_semantics<parallel>, #tpu.dimension_semantics<arbitrary>], iteration_bounds = array<i64: 2, 1>, scalar_prefetch = 0 : i64, scratch_operands = 3 : i64, tpu.core_type = #tpu.core_type<tc>, window_params = [{transform_indices = @transform_0, window_bounds = array<i64: 1, 128, 32>}, {transform_indices = @transform_1, window_bounds = array<i64: 1, 32, 16>}, {transform_indices = @transform_2, window_bounds = array<i64: 1, 32, 128>}, {transform_indices = @transform_3, window_bounds = array<i64: 1, 32, 128>}, {transform_indices = @transform_4, window_bounds = array<i64: 1, 1, 128>}, {pipeline_mode = #tpu.pipeline_mode<synchronous>, transform_indices = @transform_5, window_bounds = array<i64: 96, 128>}, {pipeline_mode = #tpu.pipeline_mode<synchronous>, transform_indices = @transform_6, window_bounds = array<i64: 1, 128>}, {pipeline_mode = #tpu.pipeline_mode<synchronous>, transform_indices = @transform_7, window_bounds = array<i64: 128, 128>}, {pipeline_mode = #tpu.pipeline_mode<synchronous>, transform_indices = @transform_8, window_bounds = array<i64: 1, 128>}, {pipeline_mode = #tpu.pipeline_mode<synchronous>, transform_indices = @transform_9, window_bounds = array<i64: 48, 128>}, {pipeline_mode = #tpu.pipeline_mode<synchronous>, transform_indices = @transform_10, window_bounds = array<i64: 1, 128>}, {pipeline_mode = #tpu.pipeline_mode<synchronous>, transform_indices = @transform_11, window_bounds = array<i64: 128, 128>}, {pipeline_mode = #tpu.pipeline_mode<synchronous>, transform_indices = @transform_12, window_bounds = array<i64: 1, 128>}, {pipeline_mode = #tpu.pipeline_mode<synchronous>, transform_indices = @transform_13, window_bounds = array<i64: 128, 128>}, {pipeline_mode = #tpu.pipeline_mode<synchronous>, transform_indices = @transform_14, window_bounds = array<i64: 1, 128>}, {transform_indices = @transform_15, window_bounds = array<i64: 1, 1, 32, 128>}, {transform_indices = @transform_16, window_bounds = array<i64: 1, 1, 32, 128>}]} {
    %c0_i32 = arith.constant 0 : i32
    %0 = arith.cmpi eq, %arg1, %c0_i32 : i32
    %1 = arith.extui %0 : i1 to i32
    %c0_i32_0 = arith.constant 0 : i32
    %2 = arith.cmpi ne, %1, %c0_i32_0 : i32
    scf.if %2 {
      %c0_26 = arith.constant 0 : index
      %c0_27 = arith.constant 0 : index
      %c0_28 = arith.constant 0 : index
      %46 = vector.load %arg2[%c0_26, %c0_27, %c0_28] : memref<1x128x32xbf16, #tpu.memory_space<vmem>>, vector<1x128x32xbf16>
      %47 = vector.shape_cast %46 : vector<1x128x32xbf16> to vector<128x32xbf16>
      %cst_29 = arith.constant 0.000000e+00 : bf16
      %48 = vector.broadcast %cst_29 : bf16 to vector<1x32xbf16>
      %49 = vector.extract_strided_slice %47 {offsets = [0, 0], sizes = [127, 32], strides = [1, 1]} : vector<128x32xbf16> to vector<127x32xbf16>
      %50 = tpu.concatenate %48, %49 in 0 : vector<1x32xbf16>, vector<127x32xbf16> -> vector<128x32xbf16>
      %51 = vector.extract_strided_slice %47 {offsets = [1, 0], sizes = [127, 32], strides = [1, 1]} : vector<128x32xbf16> to vector<127x32xbf16>
      %52 = tpu.concatenate %51, %48 in 0 : vector<127x32xbf16>, vector<1x32xbf16> -> vector<128x32xbf16>
      %53 = tpu.concatenate %50, %47, %52 in 1 : vector<128x32xbf16>, vector<128x32xbf16>, vector<128x32xbf16> -> vector<128x96xbf16>
      %c0_30 = arith.constant 0 : index
      %c0_31 = arith.constant 0 : index
      %54 = vector.load %arg7[%c0_30, %c0_31] : memref<96x128xbf16, #tpu.memory_space<vmem>>, vector<96x128xbf16>
      %cst_32 = arith.constant dense<0.000000e+00> : vector<128x128xf32>
      %55 = tpu.matmul %53, %54, %cst_32 {dimension_numbers = #tpu.dot_dimension_numbers<[1], [0], [0], [1], [0, 0, 1, 1], [], []>} : vector<128x96xbf16>, vector<96x128xbf16>, vector<128x128xf32> -> vector<128x128xf32>
      %c0_33 = arith.constant 0 : index
      %c0_34 = arith.constant 0 : index
      %56 = vector.load %arg8[%c0_33, %c0_34] : memref<1x128xf32, #tpu.memory_space<vmem>>, vector<1x128xf32>
      %57 = vector.broadcast %56 : vector<1x128xf32> to vector<128x128xf32>
      %58 = arith.addf %55, %57 : vector<128x128xf32>
      %cst_35 = arith.constant 0.000000e+00 : f32
      %59 = vector.broadcast %cst_35 : f32 to vector<128x128xf32>
      %60 = arith.maximumf %58, %59 : vector<128x128xf32>
      %61 = arith.truncf %60 : vector<128x128xf32> to vector<128x128xbf16>
      %c0_36 = arith.constant 0 : index
      %c0_37 = arith.constant 0 : index
      %62 = vector.load %arg9[%c0_36, %c0_37] : memref<128x128xbf16, #tpu.memory_space<vmem>>, vector<128x128xbf16>
      %cst_38 = arith.constant dense<0.000000e+00> : vector<128x128xf32>
      %63 = tpu.matmul %61, %62, %cst_38 {dimension_numbers = #tpu.dot_dimension_numbers<[1], [0], [0], [1], [0, 0, 1, 1], [], []>} : vector<128x128xbf16>, vector<128x128xbf16>, vector<128x128xf32> -> vector<128x128xf32>
      %c0_39 = arith.constant 0 : index
      %c0_40 = arith.constant 0 : index
      %64 = vector.load %arg10[%c0_39, %c0_40] : memref<1x128xf32, #tpu.memory_space<vmem>>, vector<1x128xf32>
      %65 = vector.broadcast %64 : vector<1x128xf32> to vector<128x128xf32>
      %66 = arith.addf %63, %65 : vector<128x128xf32>
      %67 = arith.truncf %66 : vector<128x128xf32> to vector<128x128xbf16>
      %c0_41 = arith.constant 0 : index
      %c0_42 = arith.constant 0 : index
      %68 = vector.load %arg19[%c0_41, %c0_42] : memref<128x128xbf16, #tpu.memory_space<vmem>>, vector<128x128xbf16>
      tpu.vector_store %arg19[%c0_41, %c0_42], %67 {strides = array<i32>} : memref<128x128xbf16, #tpu.memory_space<vmem>>, vector<128x128xbf16>,
      %cst_43 = arith.constant -5.000000e-04 : f32
      %69 = vector.broadcast %cst_43 : f32 to vector<1x128xf32>
      %70 = arith.mulf %66, %66 : vector<128x128xf32>
      %cst_44 = arith.constant dense<0.000000e+00> : vector<1x128xf32>
      %71 = tpu.matmul %69, %70, %cst_44 {dimension_numbers = #tpu.dot_dimension_numbers<[1], [1], [0], [0], [0, 0, 1, 0], [], []>} : vector<1x128xf32>, vector<128x128xf32>, vector<1x128xf32> -> vector<1x128xf32>
      %72 = tpu.iota {dimensions = array<i32: 1>} : vector<1x128xi32>
      %c8_i32 = arith.constant 8 : i32
      %73 = vector.broadcast %c8_i32 : i32 to vector<1x128xi32>
      %74 = arith.cmpi slt, %72, %73 : vector<1x128xi32>
      %cst_45 = arith.constant -1.000000e+30 : f32
      %75 = vector.broadcast %cst_45 : f32 to vector<1x128xf32>
      %76 = arith.select %74, %71, %75 : vector<1x128xi1>, vector<1x128xf32>
      %c0_46 = arith.constant 0 : index
      %c0_47 = arith.constant 0 : index
      %77 = vector.load %arg20[%c0_46, %c0_47] : memref<1x128xf32, #tpu.memory_space<vmem>>, vector<1x128xf32>
      tpu.vector_store %arg20[%c0_46, %c0_47], %76 {strides = array<i32>} : memref<1x128xf32, #tpu.memory_space<vmem>>, vector<1x128xf32>,
      %c0_48 = arith.constant 0 : index
      %c0_49 = arith.constant 0 : index
      %c0_50 = arith.constant 0 : index
      %78 = vector.load %arg3[%c0_48, %c0_49, %c0_50] : memref<1x32x16xbf16, #tpu.memory_space<vmem>>, vector<1x32x16xbf16>
      %79 = vector.shape_cast %78 : vector<1x32x16xbf16> to vector<32x16xbf16>
      %cst_51 = arith.constant 0.000000e+00 : bf16
      %80 = vector.broadcast %cst_51 : bf16 to vector<1x16xbf16>
      %81 = vector.extract_strided_slice %79 {offsets = [0, 0], sizes = [31, 16], strides = [1, 1]} : vector<32x16xbf16> to vector<31x16xbf16>
      %82 = tpu.concatenate %80, %81 in 0 : vector<1x16xbf16>, vector<31x16xbf16> -> vector<32x16xbf16>
      %83 = vector.extract_strided_slice %79 {offsets = [1, 0], sizes = [31, 16], strides = [1, 1]} : vector<32x16xbf16> to vector<31x16xbf16>
      %84 = tpu.concatenate %83, %80 in 0 : vector<31x16xbf16>, vector<1x16xbf16> -> vector<32x16xbf16>
      %85 = tpu.concatenate %82, %79, %84 in 1 : vector<32x16xbf16>, vector<32x16xbf16>, vector<32x16xbf16> -> vector<32x48xbf16>
      %c0_52 = arith.constant 0 : index
      %c0_53 = arith.constant 0 : index
      %86 = vector.load %arg11[%c0_52, %c0_53] : memref<48x128xbf16, #tpu.memory_space<vmem>>, vector<48x128xbf16>
      %cst_54 = arith.constant dense<0.000000e+00> : vector<32x128xf32>
      %87 = tpu.matmul %85, %86, %cst_54 {dimension_numbers = #tpu.dot_dimension_numbers<[1], [0], [0], [1], [0, 0, 1, 1], [], []>} : vector<32x48xbf16>, vector<48x128xbf16>, vector<32x128xf32> -> vector<32x128xf32>
      %c0_55 = arith.constant 0 : index
      %c0_56 = arith.constant 0 : index
      %88 = vector.load %arg12[%c0_55, %c0_56] : memref<1x128xf32, #tpu.memory_space<vmem>>, vector<1x128xf32>
      %89 = vector.broadcast %88 : vector<1x128xf32> to vector<32x128xf32>
      %90 = arith.addf %87, %89 : vector<32x128xf32>
      %cst_57 = arith.constant 0.000000e+00 : f32
      %91 = vector.broadcast %cst_57 : f32 to vector<32x128xf32>
      %92 = arith.maximumf %90, %91 : vector<32x128xf32>
      %93 = arith.truncf %92 : vector<32x128xf32> to vector<32x128xbf16>
      %c0_58 = arith.constant 0 : index
      %c0_59 = arith.constant 0 : index
      %94 = vector.load %arg13[%c0_58, %c0_59] : memref<128x128xbf16, #tpu.memory_space<vmem>>, vector<128x128xbf16>
      %cst_60 = arith.constant dense<0.000000e+00> : vector<32x128xf32>
      %95 = tpu.matmul %93, %94, %cst_60 {dimension_numbers = #tpu.dot_dimension_numbers<[1], [0], [0], [1], [0, 0, 1, 1], [], []>} : vector<32x128xbf16>, vector<128x128xbf16>, vector<32x128xf32> -> vector<32x128xf32>
      %c0_61 = arith.constant 0 : index
      %c0_62 = arith.constant 0 : index
      %96 = vector.load %arg14[%c0_61, %c0_62] : memref<1x128xf32, #tpu.memory_space<vmem>>, vector<1x128xf32>
      %97 = vector.broadcast %96 : vector<1x128xf32> to vector<32x128xf32>
      %98 = arith.addf %95, %97 : vector<32x128xf32>
      %cst_63 = arith.constant 0.000000e+00 : f32
      %99 = vector.broadcast %cst_63 : f32 to vector<32x128xf32>
      %100 = arith.maximumf %98, %99 : vector<32x128xf32>
      %101 = arith.truncf %100 : vector<32x128xf32> to vector<32x128xbf16>
      %c0_64 = arith.constant 0 : index
      %c0_65 = arith.constant 0 : index
      %102 = vector.load %arg15[%c0_64, %c0_65] : memref<128x128xbf16, #tpu.memory_space<vmem>>, vector<128x128xbf16>
      %cst_66 = arith.constant dense<0.000000e+00> : vector<32x128xf32>
      %103 = tpu.matmul %101, %102, %cst_66 {dimension_numbers = #tpu.dot_dimension_numbers<[1], [0], [0], [1], [0, 0, 1, 1], [], []>} : vector<32x128xbf16>, vector<128x128xbf16>, vector<32x128xf32> -> vector<32x128xf32>
      %c0_67 = arith.constant 0 : index
      %c0_68 = arith.constant 0 : index
      %104 = vector.load %arg16[%c0_67, %c0_68] : memref<1x128xf32, #tpu.memory_space<vmem>>, vector<1x128xf32>
      %105 = vector.broadcast %104 : vector<1x128xf32> to vector<32x128xf32>
      %106 = arith.addf %103, %105 : vector<32x128xf32>
      %cst_69 = arith.constant 1.000000e-03 : f32
      %107 = vector.broadcast %cst_69 : f32 to vector<32x128xf32>
      %108 = arith.mulf %107, %106 : vector<32x128xf32>
      %109 = arith.truncf %108 : vector<32x128xf32> to vector<32x128xbf16>
      %c0_70 = arith.constant 0 : index
      %c0_71 = arith.constant 0 : index
      %110 = vector.load %arg21[%c0_70, %c0_71] : memref<32x128xbf16, #tpu.memory_space<vmem>>, vector<32x128xbf16>
      tpu.vector_store %arg21[%c0_70, %c0_71], %109 {strides = array<i32>} : memref<32x128xbf16, #tpu.memory_space<vmem>>, vector<32x128xbf16>,
    } else {
    }
    %c32_i32 = arith.constant 32 : i32
    %3 = arith.muli %arg1, %c32_i32 : i32
    %4 = tpu.assume_multiple %3, 32 : i32
    %5 = arith.index_cast %4 : i32 to index
    %c0 = arith.constant 0 : index
    %6 = vector.load %arg21[%5, %c0] : memref<32x128xbf16, #tpu.memory_space<vmem>>, vector<32x128xbf16>
    %c0_1 = arith.constant 0 : index
    %c0_2 = arith.constant 0 : index
    %7 = vector.load %arg19[%c0_1, %c0_2] : memref<128x128xbf16, #tpu.memory_space<vmem>>, vector<128x128xbf16>
    %cst = arith.constant dense<0.000000e+00> : vector<32x128xf32>
    %8 = tpu.matmul %6, %7, %cst {dimension_numbers = #tpu.dot_dimension_numbers<[1], [1], [0], [0], [0, 0, 1, 0], [], []>} : vector<32x128xbf16>, vector<128x128xbf16>, vector<32x128xf32> -> vector<32x128xf32>
    %c0_3 = arith.constant 0 : index
    %c0_4 = arith.constant 0 : index
    %9 = vector.load %arg20[%c0_3, %c0_4] : memref<1x128xf32, #tpu.memory_space<vmem>>, vector<1x128xf32>
    %10 = vector.broadcast %9 : vector<1x128xf32> to vector<32x128xf32>
    %11 = arith.addf %8, %10 : vector<32x128xf32>
    %c0_5 = arith.constant 0 : index
    %c0_6 = arith.constant 0 : index
    %c0_7 = arith.constant 0 : index
    %12 = vector.load %arg4[%c0_5, %c0_6, %c0_7] : memref<1x32x128xf32, #tpu.memory_space<vmem>>, vector<1x32x128xf32>
    %13 = vector.shape_cast %12 : vector<1x32x128xf32> to vector<32x128xf32>
    %c0_8 = arith.constant 0 : index
    %c0_9 = arith.constant 0 : index
    %c0_10 = arith.constant 0 : index
    %14 = vector.load %arg5[%c0_8, %c0_9, %c0_10] : memref<1x32x128xf32, #tpu.memory_space<vmem>>, vector<1x32x128xf32>
    %15 = vector.shape_cast %14 : vector<1x32x128xf32> to vector<32x128xf32>
    %cst_11 = arith.constant dense<0xFF800000> : vector<32xf32>
    %16 = vector.multi_reduction <maximumf>, %11, %cst_11 [1] : vector<32x128xf32> to vector<32xf32>
    %17 = vector.shape_cast %16 : vector<32xf32> to vector<32x1xf32>
    %18 = vector.broadcast %17 : vector<32x1xf32> to vector<32x128xf32>
    %19 = arith.subf %11, %18 : vector<32x128xf32>
    %20 = math.exp %19 : vector<32x128xf32>
    %cst_12 = arith.constant dense<0.000000e+00> : vector<32xf32>
    %21 = vector.multi_reduction <add>, %20, %cst_12 [1] : vector<32x128xf32> to vector<32xf32>
    %22 = vector.shape_cast %21 : vector<32xf32> to vector<32x1xf32>
    %23 = math.log %22 : vector<32x1xf32>
    %24 = arith.addf %17, %23 : vector<32x1xf32>
    %25 = vector.broadcast %24 : vector<32x1xf32> to vector<32x128xf32>
    %26 = arith.subf %11, %25 : vector<32x128xf32>
    %27 = arith.addf %26, %15 : vector<32x128xf32>
    %c0_13 = arith.constant 0 : index
    %c0_14 = arith.constant 0 : index
    %c0_15 = arith.constant 0 : index
    %c0_16 = arith.constant 0 : index
    %28 = vector.load %arg18[%c0_13, %c0_14, %c0_15, %c0_16] : memref<1x1x32x128xf32, #tpu.memory_space<vmem>>, vector<1x1x32x128xf32>
    %29 = vector.shape_cast %28 : vector<1x1x32x128xf32> to vector<32x128xf32>
    %30 = vector.shape_cast %27 : vector<32x128xf32> to vector<1x1x32x128xf32>
    tpu.vector_store %arg18[%c0_13, %c0_14, %c0_15, %c0_16], %30 {strides = array<i32>} : memref<1x1x32x128xf32, #tpu.memory_space<vmem>>, vector<1x1x32x128xf32>,
    %31 = arith.mulf %20, %13 : vector<32x128xf32>
    %c0_17 = arith.constant 0 : index
    %c0_18 = arith.constant 0 : index
    %c0_19 = arith.constant 0 : index
    %32 = vector.load %arg6[%c0_17, %c0_18, %c0_19] : memref<1x1x128xf32, #tpu.memory_space<vmem>>, vector<1x1x128xf32>
    %33 = vector.shape_cast %32 : vector<1x1x128xf32> to vector<1x128xf32>
    %cst_20 = arith.constant 1.000000e+00 : f32
    %34 = vector.broadcast %cst_20 : f32 to vector<1x128xf32>
    %35 = arith.subf %34, %33 : vector<1x128xf32>
    %36 = vector.broadcast %35 : vector<1x128xf32> to vector<32x128xf32>
    %37 = arith.mulf %31, %36 : vector<32x128xf32>
    %cst_21 = arith.constant dense<0.000000e+00> : vector<32xf32>
    %38 = vector.multi_reduction <add>, %37, %cst_21 [1] : vector<32x128xf32> to vector<32xf32>
    %39 = vector.shape_cast %38 : vector<32xf32> to vector<32x1xf32>
    %40 = tpu.reciprocal %39 {approx = true} : vector<32x1xf32> -> vector<32x1xf32>
    %41 = vector.broadcast %40 : vector<32x1xf32> to vector<32x128xf32>
    %42 = arith.mulf %37, %41 : vector<32x128xf32>
    %c0_22 = arith.constant 0 : index
    %c0_23 = arith.constant 0 : index
    %c0_24 = arith.constant 0 : index
    %c0_25 = arith.constant 0 : index
    %43 = vector.load %arg17[%c0_22, %c0_23, %c0_24, %c0_25] : memref<1x1x32x128xf32, #tpu.memory_space<vmem>>, vector<1x1x32x128xf32>
    %44 = vector.shape_cast %43 : vector<1x1x32x128xf32> to vector<32x128xf32>
    %45 = vector.shape_cast %42 : vector<32x128xf32> to vector<1x1x32x128xf32>
    tpu.vector_store %arg17[%c0_22, %c0_23, %c0_24, %c0_25], %45 {strides = array<i32>} : memref<1x1x32x128xf32, #tpu.memory_space<vmem>>, vector<1x1x32x128xf32>,
    return
  }
  func.func @transform_0(%arg0: i32, %arg1: i32) -> (i32, i32, i32) {
    %c0_i32 = arith.constant 0 : i32
    %c0_i32_0 = arith.constant 0 : i32
    %c0_i32_1 = arith.constant 0 : i32
    return %arg0, %c0_i32, %c0_i32_0 : i32, i32, i32
  }
  func.func @transform_1(%arg0: i32, %arg1: i32) -> (i32, i32, i32) {
    %c0_i32 = arith.constant 0 : i32
    %c0_i32_0 = arith.constant 0 : i32
    %c0_i32_1 = arith.constant 0 : i32
    return %arg0, %c0_i32, %c0_i32_0 : i32, i32, i32
  }
  func.func @transform_2(%arg0: i32, %arg1: i32) -> (i32, i32, i32) {
    %c0_i32 = arith.constant 0 : i32
    %c0_i32_0 = arith.constant 0 : i32
    return %arg0, %arg1, %c0_i32 : i32, i32, i32
  }
  func.func @transform_3(%arg0: i32, %arg1: i32) -> (i32, i32, i32) {
    %c0_i32 = arith.constant 0 : i32
    %c0_i32_0 = arith.constant 0 : i32
    return %arg0, %arg1, %c0_i32 : i32, i32, i32
  }
  func.func @transform_4(%arg0: i32, %arg1: i32) -> (i32, i32, i32) {
    %c0_i32 = arith.constant 0 : i32
    %c0_i32_0 = arith.constant 0 : i32
    %c0_i32_1 = arith.constant 0 : i32
    return %arg0, %c0_i32, %c0_i32_0 : i32, i32, i32
  }
  func.func @transform_5(%arg0: i32, %arg1: i32) -> (i32, i32) {
    %c0_i32 = arith.constant 0 : i32
    %c0_i32_0 = arith.constant 0 : i32
    %c0_i32_1 = arith.constant 0 : i32
    return %c0_i32, %c0_i32_0 : i32, i32
  }
  func.func @transform_6(%arg0: i32, %arg1: i32) -> (i32, i32) {
    %c0_i32 = arith.constant 0 : i32
    %c0_i32_0 = arith.constant 0 : i32
    %c0_i32_1 = arith.constant 0 : i32
    return %c0_i32, %c0_i32_0 : i32, i32
  }
  func.func @transform_7(%arg0: i32, %arg1: i32) -> (i32, i32) {
    %c0_i32 = arith.constant 0 : i32
    %c0_i32_0 = arith.constant 0 : i32
    %c0_i32_1 = arith.constant 0 : i32
    return %c0_i32, %c0_i32_0 : i32, i32
  }
  func.func @transform_8(%arg0: i32, %arg1: i32) -> (i32, i32) {
    %c0_i32 = arith.constant 0 : i32
    %c0_i32_0 = arith.constant 0 : i32
    %c0_i32_1 = arith.constant 0 : i32
    return %c0_i32, %c0_i32_0 : i32, i32
  }
  func.func @transform_9(%arg0: i32, %arg1: i32) -> (i32, i32) {
    %c0_i32 = arith.constant 0 : i32
    %c0_i32_0 = arith.constant 0 : i32
    %c0_i32_1 = arith.constant 0 : i32
    return %c0_i32, %c0_i32_0 : i32, i32
  }
  func.func @transform_10(%arg0: i32, %arg1: i32) -> (i32, i32) {
    %c0_i32 = arith.constant 0 : i32
    %c0_i32_0 = arith.constant 0 : i32
    %c0_i32_1 = arith.constant 0 : i32
    return %c0_i32, %c0_i32_0 : i32, i32
  }
  func.func @transform_11(%arg0: i32, %arg1: i32) -> (i32, i32) {
    %c0_i32 = arith.constant 0 : i32
    %c0_i32_0 = arith.constant 0 : i32
    %c0_i32_1 = arith.constant 0 : i32
    return %c0_i32, %c0_i32_0 : i32, i32
  }
  func.func @transform_12(%arg0: i32, %arg1: i32) -> (i32, i32) {
    %c0_i32 = arith.constant 0 : i32
    %c0_i32_0 = arith.constant 0 : i32
    %c0_i32_1 = arith.constant 0 : i32
    return %c0_i32, %c0_i32_0 : i32, i32
  }
  func.func @transform_13(%arg0: i32, %arg1: i32) -> (i32, i32) {
    %c0_i32 = arith.constant 0 : i32
    %c0_i32_0 = arith.constant 0 : i32
    %c0_i32_1 = arith.constant 0 : i32
    return %c0_i32, %c0_i32_0 : i32, i32
  }
  func.func @transform_14(%arg0: i32, %arg1: i32) -> (i32, i32) {
    %c0_i32 = arith.constant 0 : i32
    %c0_i32_0 = arith.constant 0 : i32
    %c0_i32_1 = arith.constant 0 : i32
    return %c0_i32, %c0_i32_0 : i32, i32
  }
  func.func @transform_15(%arg0: i32, %arg1: i32) -> (i32, i32, i32, i32) {
    %c0_i32 = arith.constant 0 : i32
    %c0_i32_0 = arith.constant 0 : i32
    %c0_i32_1 = arith.constant 0 : i32
    return %arg0, %c0_i32, %arg1, %c0_i32_0 : i32, i32, i32, i32
  }
  func.func @transform_16(%arg0: i32, %arg1: i32) -> (i32, i32, i32, i32) {
    %c0_i32 = arith.constant 0 : i32
    %c0_i32_0 = arith.constant 0 : i32
    %c0_i32_1 = arith.constant 0 : i32
    return %arg0, %c0_i32, %arg1, %c0_i32_0 : i32, i32, i32, i32
  }
}

</mosaic_0001>

<llo_original>
// kernel: tpu_custom_call.1
$region0: #{tpu_custom_call.1}
  #allocation0 [shape = 'u32[]', space=smem, size = 0x4, offset = 0x4, fixed_abs, tag = 'smem constant byte address 0x4 - core index']
  #allocation1 [shape = 'u32[144,128]{1,0:T(1,128)}', space=vmem, size = 0x12000, scoped, tag = 'internal scratch']
  #allocation2 [shape = 'bf16[128,128]{1,0:T(16,128)(2,1)}', space=vmem, size = 0x8000, scoped, tag = 'scratch operand']
  #allocation3 [shape = 'f32[1,128]{1,0:T(1,128)}', space=vmem, size = 0x200, scoped, tag = 'scratch operand']
  #allocation4 [shape = 'bf16[32,128]{1,0:T(16,128)(2,1)}', space=vmem, size = 0x2000, scoped, tag = 'scratch operand']
  %s0 = inlined_call_operand.vmem [shape: bf16[2,128,32], index: 0, kind: input, shape index: {}]
  %s1 = inlined_call_operand.vmem [shape: bf16[2,32,16], index: 1, kind: input, shape index: {}]
  %s2 = inlined_call_operand.vmem [shape: f32[2,32,128], index: 2, kind: input, shape index: {}]
  %s3 = inlined_call_operand.vmem [shape: f32[2,32,128], index: 3, kind: input, shape index: {}]
  %s4 = inlined_call_operand.hbm [shape: f32[2,1,128], index: 4, kind: input, shape index: {}]
  %s5 = inlined_call_operand.hbm [shape: bf16[96,128], index: 5, kind: input, shape index: {}]
  %s6 = inlined_call_operand.vmem [shape: f32[1,128], index: 6, kind: input, shape index: {}]
  %s7 = inlined_call_operand.vmem [shape: bf16[128,128], index: 7, kind: input, shape index: {}]
  %s8 = inlined_call_operand.hbm [shape: f32[1,128], index: 8, kind: input, shape index: {}]
  %s9 = inlined_call_operand.hbm [shape: bf16[48,128], index: 9, kind: input, shape index: {}]
  %s10 = inlined_call_operand.hbm [shape: f32[1,128], index: 10, kind: input, shape index: {}]
  %s11 = inlined_call_operand.hbm [shape: bf16[128,128], index: 11, kind: input, shape index: {}]
  %s12 = inlined_call_operand.hbm [shape: f32[1,128], index: 12, kind: input, shape index: {}]
  %s13 = inlined_call_operand.vmem [shape: bf16[128,128], index: 13, kind: input, shape index: {}]
  %s14 = inlined_call_operand.vmem [shape: f32[1,128], index: 14, kind: input, shape index: {}]
  %s15 = inlined_call_operand.hbm [shape: f32[2,1,32,128], index: 15, kind: output, shape index: {0}]
  %s16 = inlined_call_operand.hbm [shape: f32[2,1,32,128], index: 16, kind: output, shape index: {1}]
  %17 = xla_tuple %s15, %s16
  %s18 = sld [smem:[#allocation0]]
  $region133: #{tpu_custom_call.1} parent=0
    _
  %s20 = ssub.s32 1, %s18
  %s21 = scalar_select 0, %s20, %s18
  $region1: #{tpu_custom_call.1} parent=0
    #allocation5 [shape = 'u8[1024]{0}', space=vmem, size = 0x400, scoped, tag = 'input window, operand 4']
    #allocation6 [shape = 's32[2]{0}', space=sflag, size = 0x8, scoped, tag = 'scoped memory for tpu_custom_call.1']
    #allocation7 [shape = 's32[2]{0}', space=sflag, size = 0x8, scoped, tag = 'scoped memory for tpu_custom_call.1']
    #allocation8 [shape = 'u8[24576]{0}', space=vmem, size = 0x6000, scoped, tag = 'input window, operand 5, single buffered']
    #allocation9 [shape = 's32[1]{0}', space=sflag, size = 0x4, scoped, tag = 'scoped memory for tpu_custom_call.1']
    #allocation10 [shape = 'u8[512]{0}', space=vmem, size = 0x400, scoped, tag = 'input window, operand 8, single buffered']
    #allocation11 [shape = 'u8[12288]{0}', space=vmem, size = 0x3000, scoped, tag = 'input window, operand 9, single buffered']
    #allocation12 [shape = 's32[1]{0}', space=sflag, size = 0x4, scoped, tag = 'scoped memory for tpu_custom_call.1']
    #allocation13 [shape = 'u8[512]{0}', space=vmem, size = 0x400, scoped, tag = 'input window, operand 10, single buffered']
    #allocation14 [shape = 'u8[32768]{0}', space=vmem, size = 0x8000, scoped, tag = 'input window, operand 11, single buffered']
    #allocation15 [shape = 's32[1]{0}', space=sflag, size = 0x4, scoped, tag = 'scoped memory for tpu_custom_call.1']
    #allocation16 [shape = 'u8[512]{0}', space=vmem, size = 0x400, scoped, tag = 'input window, operand 12, single buffered']
    #allocation17 [shape = 'u8[32768]{0}', space=vmem, size = 0x8000, scoped, tag = 'output window, operand 0']
    #allocation18 [shape = 'u8[32768]{0}', space=vmem, size = 0x8000, scoped, tag = 'output window, operand 1']
    #allocation19 [shape = 's32[2]{0}', space=sflag, size = 0x8, scoped, tag = 'scoped memory for tpu_custom_call.1']
    %22 = vsyncpa [#allocation6], 0
    %s23 = scalar_lea.sflag [#allocation6], 1
    %24 = vsyncpa %s23, 0
    %25 = vsyncpa [#allocation9], 0
    %26 = vsyncpa [#allocation12], 0
    %27 = vsyncpa [#allocation15], 0
    %28 = vsyncpa [#allocation7], 0
    %s29 = scalar_lea.sflag [#allocation7], 1
    %30 = vsyncpa %s29, 0
    %31 = vsyncpa [#allocation19], 0
    %s32 = scalar_lea.sflag [#allocation19], 1
    %33 = vsyncpa %s32, 0
    loop: start=0, step=1, limit=4
    $region2: #{tpu_custom_call.1} parent=1 // loop_pre_header
      _
    $region3: #{tpu_custom_call.1} parent=1 // loop_header
      %s35 = sphi 0, %s39
      %p36 = scmp.ge.s32.totalorder %s35, 4
      %s42 = sphi 0, %s54
      %s43 = sphi 0, %s50
      %s44 = sphi 0, %s42
      %s45 = sphi 0, %s43
      %s46 = sphi 0, %s44
      %s47 = sphi 0, %s45
      %s57 = sphi 0, %s59
      %s60 = sphi 0, %s57
      %s61 = sphi 0, %s60
      %s77 = sphi 0, %s61
      %s83 = sphi 0, %s85
      %s86 = sphi 0, %s83
      %s87 = sphi 0, %s86
      %s103 = sphi 0, %s87
      %s111 = sphi 0, %s113
      %s114 = sphi 0, %s111
      %s115 = sphi 0, %s114
      %s131 = sphi 0, %s115
      %s139 = sphi 0, %s141
      %s142 = sphi 0, %s139
      %s143 = sphi 0, %s142
      %s159 = sphi 0, %s143
      %s165 = sphi 0, %s167
      %s168 = sphi 0, %s165
      %s169 = sphi 0, %s168
      %s185 = sphi 0, %s169
      %s189 = sphi 0, %s189
      %s191 = sphi 0, %s189
      %s192 = sphi 0, %s191
      %s206 = sphi 0, %s192
      %s210 = sphi 0, %s210
      %s212 = sphi 0, %s210
      %s213 = sphi 0, %s212
      %s227 = sphi 0, %s213
      %s231 = sphi 0, %s231
      %s233 = sphi 0, %s231
      %s234 = sphi 0, %s233
      %s248 = sphi 0, %s234
      %s252 = sphi 0, %s252
      %s254 = sphi 0, %s252
      %s255 = sphi 0, %s254
      %s269 = sphi 0, %s255
      %s273 = sphi 0, %s273
      %s275 = sphi 0, %s273
      %s276 = sphi 0, %s275
      %s290 = sphi 0, %s276
      %s294 = sphi 0, %s294
      %s296 = sphi 0, %s294
      %s297 = sphi 0, %s296
      %s311 = sphi 0, %s297
      %s315 = sphi 0, %s315
      %s317 = sphi 0, %s315
      %s318 = sphi 0, %s317
      %s332 = sphi 0, %s318
      %s336 = sphi 0, %s336
      %s338 = sphi 0, %s336
      %s339 = sphi 0, %s338
      %s353 = sphi 0, %s339
      %s357 = sphi 0, %s357
      %s359 = sphi 0, %s357
      %s360 = sphi 0, %s359
      %s374 = sphi 0, %s360
      %s378 = sphi 0, %s378
      %s380 = sphi 0, %s378
      %s381 = sphi 0, %s380
      %s395 = sphi 0, %s381
      %s403 = sphi 0, %s405
      %s406 = sphi 0, %s403
      %s407 = sphi 0, %s406
      %s423 = sphi 0, %s407
      %s431 = sphi 0, %s433
      %s434 = sphi 0, %s431
      %s435 = sphi 0, %s434
      %s451 = sphi 0, %s435
    $region4: #{tpu_custom_call.1} parent=1 // loop_header_branch
      %38 = sbr.rel (%p36) target = $region8
    $region5: #{tpu_custom_call.1} parent=1 // loop_body
      %s40 = ssub.s32 %s35, 1
      %s41 = ssub.s32 %s35, 2
      %s48 = sadd.s32 1, %s43
      %p49 = scmp.ge.s32.totalorder %s48, 1
      %s50 = scalar_select %p49, 0, %s48
      %s51 = sadd.s32 1, %s42
      %s52 = scalar_select %p49, %s51, %s42
      %p53 = scmp.ge.s32.totalorder %s52, 2
      %s54 = scalar_select %p53, 0, %s52
      %s55 = ssub.s32 %s42, %s54
      %p56 = scmp.eq.s32.totalorder %s55, 0
      %s58 = sadd.s32 %s57, 1
      %s59 = scalar_select %p56, %s57, %s58
      %p62 = pneg %p56
      %p63 = scmp.eq.s32.totalorder %s35, 1
      %p64 = por %p62, %p63
      %p65 = scmp.ne.s32.totalorder %s57, %s60
      %p66 = scmp.eq.s32.totalorder %s35, 0
      %p67 = por %p65, %p66
      %p68 = scmp.ne.s32.totalorder %s57, %s60
      %p69 = scmp.eq.s32.totalorder %s40, 1
      %p70 = por %p68, %p69
      %p71 = scmp.ne.s32.totalorder %s60, %s61
      %p72 = scmp.eq.s32.totalorder %s40, 0
      %p73 = por %p71, %p72
      %p74 = scmp.ne.s32.totalorder %s60, %s61
      %p75 = scmp.eq.s32.totalorder %s41, 1
      %p76 = por %p74, %p75
      %p78 = scmp.ne.s32.totalorder %s61, %s77
      %p79 = scmp.eq.s32.totalorder %s41, 0
      %p80 = por %p78, %p79
      %s81 = ssub.s32 %s42, %s54
      %p82 = scmp.eq.s32.totalorder %s81, 0
      %s84 = sadd.s32 %s83, 1
      %s85 = scalar_select %p82, %s83, %s84
      %p88 = pneg %p82
      %p89 = scmp.eq.s32.totalorder %s35, 1
      %p90 = por %p88, %p89
      %p91 = scmp.ne.s32.totalorder %s83, %s86
      %p92 = scmp.eq.s32.totalorder %s35, 0
      %p93 = por %p91, %p92
      %p94 = scmp.ne.s32.totalorder %s83, %s86
      %p95 = scmp.eq.s32.totalorder %s40, 1
      %p96 = por %p94, %p95
      %p97 = scmp.ne.s32.totalorder %s86, %s87
      %p98 = scmp.eq.s32.totalorder %s40, 0
      %p99 = por %p97, %p98
      %p100 = scmp.ne.s32.totalorder %s86, %s87
      %p101 = scmp.eq.s32.totalorder %s41, 1
      %p102 = por %p100, %p101
      %p104 = scmp.ne.s32.totalorder %s87, %s103
      %p105 = scmp.eq.s32.totalorder %s41, 0
      %p106 = por %p104, %p105
      %s107 = ssub.s32 %s42, %s54
      %s108 = ssub.s32 %s43, %s50
      %s109 = sor.u32 %s107, %s108
      %p110 = scmp.eq.s32.totalorder %s109, 0
      %s112 = sadd.s32 %s111, 1
      %s113 = scalar_select %p110, %s111, %s112
      %p116 = pneg %p110
      %p117 = scmp.eq.s32.totalorder %s35, 1
      %p118 = por %p116, %p117
      %p119 = scmp.ne.s32.totalorder %s111, %s114
      %p120 = scmp.eq.s32.totalorder %s35, 0
      %p121 = por %p119, %p120
      %p122 = scmp.ne.s32.totalorder %s111, %s114
      %p123 = scmp.eq.s32.totalorder %s40, 1
      %p124 = por %p122, %p123
      %p125 = scmp.ne.s32.totalorder %s114, %s115
      %p126 = scmp.eq.s32.totalorder %s40, 0
      %p127 = por %p125, %p126
      %p128 = scmp.ne.s32.totalorder %s114, %s115
      %p129 = scmp.eq.s32.totalorder %s41, 1
      %p130 = por %p128, %p129
      %p132 = scmp.ne.s32.totalorder %s115, %s131
      %p133 = scmp.eq.s32.totalorder %s41, 0
      %p134 = por %p132, %p133
      %s135 = ssub.s32 %s42, %s54
      %s136 = ssub.s32 %s43, %s50
      %s137 = sor.u32 %s135, %s136
      %p138 = scmp.eq.s32.totalorder %s137, 0
      %s140 = sadd.s32 %s139, 1
      %s141 = scalar_select %p138, %s139, %s140
      %p144 = pneg %p138
      %p145 = scmp.eq.s32.totalorder %s35, 1
      %p146 = por %p144, %p145
      %p147 = scmp.ne.s32.totalorder %s139, %s142
      %p148 = scmp.eq.s32.totalorder %s35, 0
      %p149 = por %p147, %p148
      %p150 = scmp.ne.s32.totalorder %s139, %s142
      %p151 = scmp.eq.s32.totalorder %s40, 1
      %p152 = por %p150, %p151
      %p153 = scmp.ne.s32.totalorder %s142, %s143
      %p154 = scmp.eq.s32.totalorder %s40, 0
      %p155 = por %p153, %p154
      %p156 = scmp.ne.s32.totalorder %s142, %s143
      %p157 = scmp.eq.s32.totalorder %s41, 1
      %p158 = por %p156, %p157
      %p160 = scmp.ne.s32.totalorder %s143, %s159
      %p161 = scmp.eq.s32.totalorder %s41, 0
      %p162 = por %p160, %p161
      %s163 = ssub.s32 %s42, %s54
      %p164 = scmp.eq.s32.totalorder %s163, 0
      %s166 = sadd.s32 %s165, 1
      %s167 = scalar_select %p164, %s165, %s166
      %p170 = pneg %p164
      %p171 = scmp.eq.s32.totalorder %s35, 1
      %p172 = por %p170, %p171
      %p173 = scmp.ne.s32.totalorder %s165, %s168
      %p174 = scmp.eq.s32.totalorder %s35, 0
      %p175 = por %p173, %p174
      %p176 = scmp.ne.s32.totalorder %s165, %s168
      %p177 = scmp.eq.s32.totalorder %s40, 1
      %p178 = por %p176, %p177
      %p179 = scmp.ne.s32.totalorder %s168, %s169
      %p180 = scmp.eq.s32.totalorder %s40, 0
      %p181 = por %p179, %p180
      %p182 = scmp.ne.s32.totalorder %s168, %s169
      %p183 = scmp.eq.s32.totalorder %s41, 1
      %p184 = por %p182, %p183
      %p186 = scmp.ne.s32.totalorder %s169, %s185
      %p187 = scmp.eq.s32.totalorder %s41, 0
      %p188 = por %p186, %p187
      %s190 = sadd.s32 %s189, 1
      %p193 = scmp.eq.s32.totalorder %s35, 1
      %p194 = scmp.ne.s32.totalorder %s189, %s191
      %p195 = scmp.eq.s32.totalorder %s35, 0
      %p196 = por %p194, %p195
      %p197 = scmp.ne.s32.totalorder %s189, %s191
      %p198 = scmp.eq.s32.totalorder %s40, 1
      %p199 = por %p197, %p198
      %p200 = scmp.ne.s32.totalorder %s191, %s192
      %p201 = scmp.eq.s32.totalorder %s40, 0
      %p202 = por %p200, %p201
      %p203 = scmp.ne.s32.totalorder %s191, %s192
      %p204 = scmp.eq.s32.totalorder %s41, 1
      %p205 = por %p203, %p204
      %p207 = scmp.ne.s32.totalorder %s192, %s206
      %p208 = scmp.eq.s32.totalorder %s41, 0
      %p209 = por %p207, %p208
      %s211 = sadd.s32 %s210, 1
      %p214 = scmp.eq.s32.totalorder %s35, 1
      %p215 = scmp.ne.s32.totalorder %s210, %s212
      %p216 = scmp.eq.s32.totalorder %s35, 0
      %p217 = por %p215, %p216
      %p218 = scmp.ne.s32.totalorder %s210, %s212
      %p219 = scmp.eq.s32.totalorder %s40, 1
      %p220 = por %p218, %p219
      %p221 = scmp.ne.s32.totalorder %s212, %s213
      %p222 = scmp.eq.s32.totalorder %s40, 0
      %p223 = por %p221, %p222
      %p224 = scmp.ne.s32.totalorder %s212, %s213
      %p225 = scmp.eq.s32.totalorder %s41, 1
      %p226 = por %p224, %p225
      %p228 = scmp.ne.s32.totalorder %s213, %s227
      %p229 = scmp.eq.s32.totalorder %s41, 0
      %p230 = por %p228, %p229
      %s232 = sadd.s32 %s231, 1
      %p235 = scmp.eq.s32.totalorder %s35, 1
      %p236 = scmp.ne.s32.totalorder %s231, %s233
      %p237 = scmp.eq.s32.totalorder %s35, 0
      %p238 = por %p236, %p237
      %p239 = scmp.ne.s32.totalorder %s231, %s233
      %p240 = scmp.eq.s32.totalorder %s40, 1
      %p241 = por %p239, %p240
      %p242 = scmp.ne.s32.totalorder %s233, %s234
      %p243 = scmp.eq.s32.totalorder %s40, 0
      %p244 = por %p242, %p243
      %p245 = scmp.ne.s32.totalorder %s233, %s234
      %p246 = scmp.eq.s32.totalorder %s41, 1
      %p247 = por %p245, %p246
      %p249 = scmp.ne.s32.totalorder %s234, %s248
      %p250 = scmp.eq.s32.totalorder %s41, 0
      %p251 = por %p249, %p250
      %s253 = sadd.s32 %s252, 1
      %p256 = scmp.eq.s32.totalorder %s35, 1
      %p257 = scmp.ne.s32.totalorder %s252, %s254
      %p258 = scmp.eq.s32.totalorder %s35, 0
      %p259 = por %p257, %p258
      %p260 = scmp.ne.s32.totalorder %s252, %s254
      %p261 = scmp.eq.s32.totalorder %s40, 1
      %p262 = por %p260, %p261
      %p263 = scmp.ne.s32.totalorder %s254, %s255
      %p264 = scmp.eq.s32.totalorder %s40, 0
      %p265 = por %p263, %p264
      %p266 = scmp.ne.s32.totalorder %s254, %s255
      %p267 = scmp.eq.s32.totalorder %s41, 1
      %p268 = por %p266, %p267
      %p270 = scmp.ne.s32.totalorder %s255, %s269
      %p271 = scmp.eq.s32.totalorder %s41, 0
      %p272 = por %p270, %p271
      %s274 = sadd.s32 %s273, 1
      %p277 = scmp.eq.s32.totalorder %s35, 1
      %p278 = scmp.ne.s32.totalorder %s273, %s275
      %p279 = scmp.eq.s32.totalorder %s35, 0
      %p280 = por %p278, %p279
      %p281 = scmp.ne.s32.totalorder %s273, %s275
      %p282 = scmp.eq.s32.totalorder %s40, 1
      %p283 = por %p281, %p282
      %p284 = scmp.ne.s32.totalorder %s275, %s276
      %p285 = scmp.eq.s32.totalorder %s40, 0
      %p286 = por %p284, %p285
      %p287 = scmp.ne.s32.totalorder %s275, %s276
      %p288 = scmp.eq.s32.totalorder %s41, 1
      %p289 = por %p287, %p288
      %p291 = scmp.ne.s32.totalorder %s276, %s290
      %p292 = scmp.eq.s32.totalorder %s41, 0
      %p293 = por %p291, %p292
      %s295 = sadd.s32 %s294, 1
      %p298 = scmp.eq.s32.totalorder %s35, 1
      %p299 = scmp.ne.s32.totalorder %s294, %s296
      %p300 = scmp.eq.s32.totalorder %s35, 0
      %p301 = por %p299, %p300
      %p302 = scmp.ne.s32.totalorder %s294, %s296
      %p303 = scmp.eq.s32.totalorder %s40, 1
      %p304 = por %p302, %p303
      %p305 = scmp.ne.s32.totalorder %s296, %s297
      %p306 = scmp.eq.s32.totalorder %s40, 0
      %p307 = por %p305, %p306
      %p308 = scmp.ne.s32.totalorder %s296, %s297
      %p309 = scmp.eq.s32.totalorder %s41, 1
      %p310 = por %p308, %p309
      %p312 = scmp.ne.s32.totalorder %s297, %s311
      %p313 = scmp.eq.s32.totalorder %s41, 0
      %p314 = por %p312, %p313
      %s316 = sadd.s32 %s315, 1
      %p319 = scmp.eq.s32.totalorder %s35, 1
      %p320 = scmp.ne.s32.totalorder %s315, %s317
      %p321 = scmp.eq.s32.totalorder %s35, 0
      %p322 = por %p320, %p321
      %p323 = scmp.ne.s32.totalorder %s315, %s317
      %p324 = scmp.eq.s32.totalorder %s40, 1
      %p325 = por %p323, %p324
      %p326 = scmp.ne.s32.totalorder %s317, %s318
      %p327 = scmp.eq.s32.totalorder %s40, 0
      %p328 = por %p326, %p327
      %p329 = scmp.ne.s32.totalorder %s317, %s318
      %p330 = scmp.eq.s32.totalorder %s41, 1
      %p331 = por %p329, %p330
      %p333 = scmp.ne.s32.totalorder %s318, %s332
      %p334 = scmp.eq.s32.totalorder %s41, 0
      %p335 = por %p333, %p334
      %s337 = sadd.s32 %s336, 1
      %p340 = scmp.eq.s32.totalorder %s35, 1
      %p341 = scmp.ne.s32.totalorder %s336, %s338
      %p342 = scmp.eq.s32.totalorder %s35, 0
      %p343 = por %p341, %p342
      %p344 = scmp.ne.s32.totalorder %s336, %s338
      %p345 = scmp.eq.s32.totalorder %s40, 1
      %p346 = por %p344, %p345
      %p347 = scmp.ne.s32.totalorder %s338, %s339
      %p348 = scmp.eq.s32.totalorder %s40, 0
      %p349 = por %p347, %p348
      %p350 = scmp.ne.s32.totalorder %s338, %s339
      %p351 = scmp.eq.s32.totalorder %s41, 1
      %p352 = por %p350, %p351
      %p354 = scmp.ne.s32.totalorder %s339, %s353
      %p355 = scmp.eq.s32.totalorder %s41, 0
      %p356 = por %p354, %p355
      %s358 = sadd.s32 %s357, 1
      %p361 = scmp.eq.s32.totalorder %s35, 1
      %p362 = scmp.ne.s32.totalorder %s357, %s359
      %p363 = scmp.eq.s32.totalorder %s35, 0
      %p364 = por %p362, %p363
      %p365 = scmp.ne.s32.totalorder %s357, %s359
      %p366 = scmp.eq.s32.totalorder %s40, 1
      %p367 = por %p365, %p366
      %p368 = scmp.ne.s32.totalorder %s359, %s360
      %p369 = scmp.eq.s32.totalorder %s40, 0
      %p370 = por %p368, %p369
      %p371 = scmp.ne.s32.totalorder %s359, %s360
      %p372 = scmp.eq.s32.totalorder %s41, 1
      %p373 = por %p371, %p372
      %p375 = scmp.ne.s32.totalorder %s360, %s374
      %p376 = scmp.eq.s32.totalorder %s41, 0
      %p377 = por %p375, %p376
      %s379 = sadd.s32 %s378, 1
      %p382 = scmp.eq.s32.totalorder %s35, 1
      %p383 = scmp.ne.s32.totalorder %s378, %s380
      %p384 = scmp.eq.s32.totalorder %s35, 0
      %p385 = por %p383, %p384
      %p386 = scmp.ne.s32.totalorder %s378, %s380
      %p387 = scmp.eq.s32.totalorder %s40, 1
      %p388 = por %p386, %p387
      %p389 = scmp.ne.s32.totalorder %s380, %s381
      %p390 = scmp.eq.s32.totalorder %s40, 0
      %p391 = por %p389, %p390
      %p392 = scmp.ne.s32.totalorder %s380, %s381
      %p393 = scmp.eq.s32.totalorder %s41, 1
      %p394 = por %p392, %p393
      %p396 = scmp.ne.s32.totalorder %s381, %s395
      %p397 = scmp.eq.s32.totalorder %s41, 0
      %p398 = por %p396, %p397
      %s399 = ssub.s32 %s42, %s54
      %s400 = ssub.s32 %s43, %s50
      %s401 = sor.u32 %s399, %s400
      %p402 = scmp.eq.s32.totalorder %s401, 0
      %s404 = sadd.s32 %s403, 1
      %s405 = scalar_select %p402, %s403, %s404
      %p408 = pneg %p402
      %p409 = scmp.eq.s32.totalorder %s35, 1
      %p410 = por %p408, %p409
      %p411 = scmp.ne.s32.totalorder %s403, %s406
      %p412 = scmp.eq.s32.totalorder %s35, 0
      %p413 = por %p411, %p412
      %p414 = scmp.ne.s32.totalorder %s403, %s406
      %p415 = scmp.eq.s32.totalorder %s40, 1
      %p416 = por %p414, %p415
      %p417 = scmp.ne.s32.totalorder %s406, %s407
      %p418 = scmp.eq.s32.totalorder %s40, 0
      %p419 = por %p417, %p418
      %p420 = scmp.ne.s32.totalorder %s406, %s407
      %p421 = scmp.eq.s32.totalorder %s41, 1
      %p422 = por %p420, %p421
      %p424 = scmp.ne.s32.totalorder %s407, %s423
      %p425 = scmp.eq.s32.totalorder %s41, 0
      %p426 = por %p424, %p425
      %s427 = ssub.s32 %s42, %s54
      %s428 = ssub.s32 %s43, %s50
      %s429 = sor.u32 %s427, %s428
      %p430 = scmp.eq.s32.totalorder %s429, 0
      %s432 = sadd.s32 %s431, 1
      %s433 = scalar_select %p430, %s431, %s432
      %p436 = pneg %p430
      %p437 = scmp.eq.s32.totalorder %s35, 1
      %p438 = por %p436, %p437
      %p439 = scmp.ne.s32.totalorder %s431, %s434
      %p440 = scmp.eq.s32.totalorder %s35, 0
      %p441 = por %p439, %p440
      %p442 = scmp.ne.s32.totalorder %s431, %s434
      %p443 = scmp.eq.s32.totalorder %s40, 1
      %p444 = por %p442, %p443
      %p445 = scmp.ne.s32.totalorder %s434, %s435
      %p446 = scmp.eq.s32.totalorder %s40, 0
      %p447 = por %p445, %p446
      %p448 = scmp.ne.s32.totalorder %s434, %s435
      %p449 = scmp.eq.s32.totalorder %s41, 1
      %p450 = por %p448, %p449
      %p452 = scmp.ne.s32.totalorder %s435, %s451
      %p453 = scmp.eq.s32.totalorder %s41, 0
      %p454 = por %p452, %p453
      %p455 = scmp.le.s32.totalorder 1, %s35
      %p456 = scmp.lt.s32.totalorder %s35, 3
      %p457 = pnand %p455, %p456
      %p458 = pneg %p457
      // Predicated region
      $region9: #{tpu_custom_call.1} parent=5 // pred_check
        _
      $region10: #{tpu_custom_call.1} parent=5 // pred_check_branch
        %460 = sbr.rel (%p457) target = $region12
      $region11: #{tpu_custom_call.1} parent=5 // pred_region
        %s461 = ssub.s32 %s35, 1
        // Predicated region
        $region13: #{tpu_custom_call.1} parent=11 // pred_check
          %p462 = pneg %p202
        $region14: #{tpu_custom_call.1} parent=11 // pred_check_branch
          %464 = sbr.rel (%p462) target = $region16
        $region15: #{tpu_custom_call.1} parent=11 // pred_region
          %s466 = ssub.s32 768, 768
          %467 = vsyncadd [#allocation9], %s466
          %s468 = sshll.u32 [#allocation8], 4
          %s469 = int_to_ptr.vmem [resolvable:$true] %s468
          %474 = dma.hbm_to_vmem [thread:$0]  %s5, 768, %s469, [#allocation9], 64, 64, 4
        $region16: #{tpu_custom_call.1} parent=11 // pred_fallthru
          _
        // Predicated region
        $region17: #{tpu_custom_call.1} parent=11 // pred_check
          %p475 = pneg %p223
        $region18: #{tpu_custom_call.1} parent=11 // pred_check_branch
          %477 = sbr.rel (%p475) target = $region20
        $region19: #{tpu_custom_call.1} parent=11 // pred_region
          _
        $region20: #{tpu_custom_call.1} parent=11 // pred_fallthru
          _
        // Predicated region
        $region21: #{tpu_custom_call.1} parent=11 // pred_check
          %p478 = pneg %p244
        $region22: #{tpu_custom_call.1} parent=11 // pred_check_branch
          %480 = sbr.rel (%p478) target = $region24
        $region23: #{tpu_custom_call.1} parent=11 // pred_region
          _
        $region24: #{tpu_custom_call.1} parent=11 // pred_fallthru
          _
        // Predicated region
        $region25: #{tpu_custom_call.1} parent=11 // pred_check
          %p481 = pneg %p265
        $region26: #{tpu_custom_call.1} parent=11 // pred_check_branch
          %483 = sbr.rel (%p481) target = $region28
        $region27: #{tpu_custom_call.1} parent=11 // pred_region
          %s485 = ssub.s32 16, 16
          %486 = vsyncadd [#allocation9], %s485
          %s488 = sshll.u32 [#allocation10], 4
          %s489 = int_to_ptr.vmem [resolvable:$true] %s488
          %491 = dma.hbm_to_vmem [thread:$0]  %s8, 16, %s489, [#allocation9]
        $region28: #{tpu_custom_call.1} parent=11 // pred_fallthru
          _
        // Predicated region
        $region29: #{tpu_custom_call.1} parent=11 // pred_check
          %p492 = pneg %p286
        $region30: #{tpu_custom_call.1} parent=11 // pred_check_branch
          %494 = sbr.rel (%p492) target = $region32
        $region31: #{tpu_custom_call.1} parent=11 // pred_region
          %s496 = ssub.s32 384, 384
          %497 = vsyncadd [#allocation12], %s496
          %s498 = sshll.u32 [#allocation11], 4
          %s499 = int_to_ptr.vmem [resolvable:$true] %s498
          %504 = dma.hbm_to_vmem [thread:$0]  %s9, 384, %s499, [#allocation12], 64, 64, 4
        $region32: #{tpu_custom_call.1} parent=11 // pred_fallthru
          _
        // Predicated region
        $region33: #{tpu_custom_call.1} parent=11 // pred_check
          %p505 = pneg %p307
        $region34: #{tpu_custom_call.1} parent=11 // pred_check_branch
          %507 = sbr.rel (%p505) target = $region36
        $region35: #{tpu_custom_call.1} parent=11 // pred_region
          %s509 = ssub.s32 16, 16
          %510 = vsyncadd [#allocation12], %s509
          %s512 = sshll.u32 [#allocation13], 4
          %s513 = int_to_ptr.vmem [resolvable:$true] %s512
          %515 = dma.hbm_to_vmem [thread:$0]  %s10, 16, %s513, [#allocation12]
        $region36: #{tpu_custom_call.1} parent=11 // pred_fallthru
          _
        // Predicated region
        $region37: #{tpu_custom_call.1} parent=11 // pred_check
          %p516 = pneg %p328
        $region38: #{tpu_custom_call.1} parent=11 // pred_check_branch
          %518 = sbr.rel (%p516) target = $region40
        $region39: #{tpu_custom_call.1} parent=11 // pred_region
          %s520 = ssub.s32 1024, 1024
          %521 = vsyncadd [#allocation15], %s520
          %s522 = sshll.u32 [#allocation14], 4
          %s523 = int_to_ptr.vmem [resolvable:$true] %s522
          %528 = dma.hbm_to_vmem [thread:$0]  %s11, 1024, %s523, [#allocation15], 64, 64, 4
        $region40: #{tpu_custom_call.1} parent=11 // pred_fallthru
          _
        // Predicated region
        $region41: #{tpu_custom_call.1} parent=11 // pred_check
          %p529 = pneg %p349
        $region42: #{tpu_custom_call.1} parent=11 // pred_check_branch
          %531 = sbr.rel (%p529) target = $region44
        $region43: #{tpu_custom_call.1} parent=11 // pred_region
          %s533 = ssub.s32 16, 16
          %534 = vsyncadd [#allocation15], %s533
          %s536 = sshll.u32 [#allocation16], 4
          %s537 = int_to_ptr.vmem [resolvable:$true] %s536
          %539 = dma.hbm_to_vmem [thread:$0]  %s12, 16, %s537, [#allocation15]
        $region44: #{tpu_custom_call.1} parent=11 // pred_fallthru
          _
        // Predicated region
        $region45: #{tpu_custom_call.1} parent=11 // pred_check
          %p540 = pneg %p370
        $region46: #{tpu_custom_call.1} parent=11 // pred_check_branch
          %542 = sbr.rel (%p540) target = $region48
        $region47: #{tpu_custom_call.1} parent=11 // pred_region
          _
        $region48: #{tpu_custom_call.1} parent=11 // pred_fallthru
          _
        // Predicated region
        $region49: #{tpu_custom_call.1} parent=11 // pred_check
          %p543 = pneg %p391
        $region50: #{tpu_custom_call.1} parent=11 // pred_check_branch
          %545 = sbr.rel (%p543) target = $region52
        $region51: #{tpu_custom_call.1} parent=11 // pred_region
          _
        $region52: #{tpu_custom_call.1} parent=11 // pred_fallthru
          _
      $region12: #{tpu_custom_call.1} parent=5 // pred_fallthru
        _
      %p546 = scmp.lt.s32.totalorder %s35, 2
      // Predicated region
      $region53: #{tpu_custom_call.1} parent=5 // pred_check
        %p547 = pneg %p546
      $region54: #{tpu_custom_call.1} parent=5 // pred_check_branch
        %549 = sbr.rel (%p547) target = $region56
      $region55: #{tpu_custom_call.1} parent=5 // pred_region
        // Predicated region
        $region57: #{tpu_custom_call.1} parent=55 // pred_check
          %p550 = pneg %p67
        $region58: #{tpu_custom_call.1} parent=55 // pred_check_branch
          %552 = sbr.rel (%p550) target = $region60
        $region59: #{tpu_custom_call.1} parent=55 // pred_region
          %p553 = scmp.lt.s32.totalorder %s42, 1
          %s554 = scalar_select %p553, %s42, 1
          %s555 = smul.addr %s554, 16
          %s556 = smul.addr %s555, 4
          %s557 = scalar_lea.vmem %s0, %s556
        $region60: #{tpu_custom_call.1} parent=55 // pred_fallthru
          _
        // Predicated region
        $region61: #{tpu_custom_call.1} parent=55 // pred_check
          %p558 = pneg %p93
        $region62: #{tpu_custom_call.1} parent=55 // pred_check_branch
          %560 = sbr.rel (%p558) target = $region64
        $region63: #{tpu_custom_call.1} parent=55 // pred_region
          %p561 = scmp.lt.s32.totalorder %s42, 1
          %s562 = scalar_select %p561, %s42, 1
          %s563 = smul.addr %s562, 4
          %s564 = smul.addr %s563, 4
          %s565 = scalar_lea.vmem %s1, %s564
        $region64: #{tpu_custom_call.1} parent=55 // pred_fallthru
          _
        // Predicated region
        $region65: #{tpu_custom_call.1} parent=55 // pred_check
          %p566 = pneg %p121
        $region66: #{tpu_custom_call.1} parent=55 // pred_check_branch
          %568 = sbr.rel (%p566) target = $region68
        $region67: #{tpu_custom_call.1} parent=55 // pred_region
          %s569 = smul.u32 4, %s43
          %p570 = scmp.lt.s32.totalorder %s42, 1
          %s571 = scalar_select %p570, %s42, 1
          %p572 = scmp.lt.s32.totalorder %s569, 3
          %s573 = scalar_select %p572, %s569, 3
          %s574 = smul.addr %s571, 4
          %s575 = sadd.s32 %s573, %s574
          %s576 = smul.addr %s575, 8
          %s577 = scalar_lea.vmem %s2, %s576
          %s578 = smul.u32 4, %s43
        $region68: #{tpu_custom_call.1} parent=55 // pred_fallthru
          _
        // Predicated region
        $region69: #{tpu_custom_call.1} parent=55 // pred_check
          %p579 = pneg %p149
        $region70: #{tpu_custom_call.1} parent=55 // pred_check_branch
          %581 = sbr.rel (%p579) target = $region72
        $region71: #{tpu_custom_call.1} parent=55 // pred_region
          %s582 = smul.u32 4, %s43
          %p583 = scmp.lt.s32.totalorder %s42, 1
          %s584 = scalar_select %p583, %s42, 1
          %p585 = scmp.lt.s32.totalorder %s582, 3
          %s586 = scalar_select %p585, %s582, 3
          %s587 = smul.addr %s584, 4
          %s588 = sadd.s32 %s586, %s587
          %s589 = smul.addr %s588, 8
          %s590 = scalar_lea.vmem %s3, %s589
          %s591 = smul.u32 4, %s43
        $region72: #{tpu_custom_call.1} parent=55 // pred_fallthru
          _
        // Predicated region
        $region73: #{tpu_custom_call.1} parent=55 // pred_check
          %p592 = pneg %p175
        $region74: #{tpu_custom_call.1} parent=55 // pred_check_branch
          %594 = sbr.rel (%p592) target = $region76
        $region75: #{tpu_custom_call.1} parent=55 // pred_region
          %s595 = sand.u32 %s165, 1
          %s596 = scalar_lea.sflag [#allocation6], %s595
          %s597 = sand.u32 %s165, 1
          %s598 = scalar_lea.vmem [#allocation5], %s597
          %s600 = ssub.s32 16, 16
          %601 = vsyncadd %s596, %s600
          %s602 = smul.addr %s42, 16
          %s603 = scalar_lea.hbm %s4, %s602
          %s605 = sshll.u32 %s598, 4
          %s606 = int_to_ptr.vmem [resolvable:$true] %s605
          %608 = dma.hbm_to_vmem [thread:$0]  %s603, 16, %s606, %s596
        $region76: #{tpu_custom_call.1} parent=55 // pred_fallthru
          _
      $region56: #{tpu_custom_call.1} parent=5 // pred_fallthru
        _
      %p609 = scmp.le.s32.totalorder 1, %s35
      %p610 = scmp.lt.s32.totalorder %s35, 3
      %p611 = pnand %p609, %p610
      %p612 = pneg %p611
      // Predicated region
      $region77: #{tpu_custom_call.1} parent=5 // pred_check
        _
      $region78: #{tpu_custom_call.1} parent=5 // pred_check_branch
        %614 = sbr.rel (%p611) target = $region80
      $region79: #{tpu_custom_call.1} parent=5 // pred_region
        %s615 = ssub.s32 %s35, 1
        %s616 = sand.u32 %s168, 1
        %s617 = scalar_lea.sflag [#allocation6], %s616
        %s618 = sand.u32 %s168, 1
        %s619 = scalar_lea.vmem [#allocation5], %s618
        // Predicated region
        $region81: #{tpu_custom_call.1} parent=79 // pred_check
          %p620 = pneg %p181
        $region82: #{tpu_custom_call.1} parent=79 // pred_check_branch
          %622 = sbr.rel (%p620) target = $region84
        $region83: #{tpu_custom_call.1} parent=79 // pred_region
          %623 = dma.done %s617, 16
        $region84: #{tpu_custom_call.1} parent=79 // pred_fallthru
          _
        // Predicated region
        $region85: #{tpu_custom_call.1} parent=79 // pred_check
          %p624 = pneg %p202
        $region86: #{tpu_custom_call.1} parent=79 // pred_check_branch
          %626 = sbr.rel (%p624) target = $region88
        $region87: #{tpu_custom_call.1} parent=79 // pred_region
          %627 = dma.done [#allocation9], 768
        $region88: #{tpu_custom_call.1} parent=79 // pred_fallthru
          _
        // Predicated region
        $region89: #{tpu_custom_call.1} parent=79 // pred_check
          %p628 = pneg %p265
        $region90: #{tpu_custom_call.1} parent=79 // pred_check_branch
          %630 = sbr.rel (%p628) target = $region92
        $region91: #{tpu_custom_call.1} parent=79 // pred_region
          %631 = dma.done [#allocation9], 16
        $region92: #{tpu_custom_call.1} parent=79 // pred_fallthru
          _
        // Predicated region
        $region93: #{tpu_custom_call.1} parent=79 // pred_check
          %p632 = pneg %p286
        $region94: #{tpu_custom_call.1} parent=79 // pred_check_branch
          %634 = sbr.rel (%p632) target = $region96
        $region95: #{tpu_custom_call.1} parent=79 // pred_region
          %635 = dma.done [#allocation12], 384
        $region96: #{tpu_custom_call.1} parent=79 // pred_fallthru
          _
        // Predicated region
        $region97: #{tpu_custom_call.1} parent=79 // pred_check
          %p636 = pneg %p307
        $region98: #{tpu_custom_call.1} parent=79 // pred_check_branch
          %638 = sbr.rel (%p636) target = $region100
        $region99: #{tpu_custom_call.1} parent=79 // pred_region
          %639 = dma.done [#allocation12], 16
        $region100: #{tpu_custom_call.1} parent=79 // pred_fallthru
          _
        // Predicated region
        $region101: #{tpu_custom_call.1} parent=79 // pred_check
          %p640 = pneg %p328
        $region102: #{tpu_custom_call.1} parent=79 // pred_check_branch
          %642 = sbr.rel (%p640) target = $region104
        $region103: #{tpu_custom_call.1} parent=79 // pred_region
          %643 = dma.done [#allocation15], 1024
        $region104: #{tpu_custom_call.1} parent=79 // pred_fallthru
          _
        // Predicated region
        $region105: #{tpu_custom_call.1} parent=79 // pred_check
          %p644 = pneg %p349
        $region106: #{tpu_custom_call.1} parent=79 // pred_check_branch
          %646 = sbr.rel (%p644) target = $region108
        $region107: #{tpu_custom_call.1} parent=79 // pred_region
          %647 = dma.done [#allocation15], 16
        $region108: #{tpu_custom_call.1} parent=79 // pred_fallthru
          _
        %p648 = scmp.lt.s32.totalorder %s44, 1
        %s649 = scalar_select %p648, %s44, 1
        %s650 = smul.addr %s649, 16
        %s651 = smul.addr %s650, 4
        %s652 = scalar_lea.vmem %s0, %s651
        %p653 = pneg %p73
        %p654 = pneg %p70
        %p655 = scmp.lt.s32.totalorder %s44, 1
        %s656 = scalar_select %p655, %s44, 1
        %s657 = smul.addr %s656, 4
        %s658 = smul.addr %s657, 4
        %s659 = scalar_lea.vmem %s1, %s658
        %p660 = pneg %p99
        %p661 = pneg %p96
        %s662 = smul.u32 4, %s45
        %p663 = scmp.lt.s32.totalorder %s44, 1
        %s664 = scalar_select %p663, %s44, 1
        %p665 = scmp.lt.s32.totalorder %s662, 3
        %s666 = scalar_select %p665, %s662, 3
        %s667 = smul.addr %s664, 4
        %s668 = sadd.s32 %s666, %s667
        %s669 = smul.addr %s668, 8
        %s670 = scalar_lea.vmem %s2, %s669
        %p671 = pneg %p127
        %p672 = pneg %p124
        %s673 = smul.u32 4, %s45
        %p674 = scmp.lt.s32.totalorder %s44, 1
        %s675 = scalar_select %p674, %s44, 1
        %p676 = scmp.lt.s32.totalorder %s673, 3
        %s677 = scalar_select %p676, %s673, 3
        %s678 = smul.addr %s675, 4
        %s679 = sadd.s32 %s677, %s678
        %s680 = smul.addr %s679, 8
        %s681 = scalar_lea.vmem %s3, %s680
        %p682 = pneg %p155
        %p683 = pneg %p152
        %s684 = sand.u32 %s168, 1
        %s685 = scalar_lea.sflag [#allocation6], %s684
        %s686 = sand.u32 %s168, 1
        %s687 = scalar_lea.vmem [#allocation5], %s686
        %p688 = pneg %p181
        %p689 = pneg %p178
        %p690 = pneg %p202
        %p691 = pneg %p199
        %p692 = pneg %p223
        %p693 = pneg %p220
        %p694 = pneg %p244
        %p695 = pneg %p241
        %p696 = pneg %p265
        %p697 = pneg %p262
        %p698 = pneg %p286
        %p699 = pneg %p283
        %p700 = pneg %p307
        %p701 = pneg %p304
        %p702 = pneg %p328
        %p703 = pneg %p325
        %p704 = pneg %p349
        %p705 = pneg %p346
        %p706 = pneg %p370
        %p707 = pneg %p367
        %p708 = pneg %p391
        %p709 = pneg %p388
        %p710 = pneg %p419
        %p711 = pneg %p416
        %s712 = sand.u32 %s406, 1
        %s713 = scalar_lea.sflag [#allocation7], %s712
        %s714 = sand.u32 %s406, 1
        %s715 = smul.addr %s714, 32
        %s716 = scalar_lea.vmem [#allocation17], %s715
        %p717 = pneg %p447
        %p718 = pneg %p444
        %s719 = sand.u32 %s434, 1
        %s720 = scalar_lea.sflag [#allocation19], %s719
        %s721 = sand.u32 %s434, 1
        %s722 = smul.addr %s721, 32
        %s723 = scalar_lea.vmem [#allocation18], %s722
        %p724 = scmp.lt.s32.totalorder %s44, 1
        %s725 = scalar_select %p724, %s44, 1
        %s726 = smul.addr %s725, 16
        %s727 = smul.addr %s726, 4
        %s728 = scalar_lea.vmem %s0, %s727
        %p729 = scmp.lt.s32.totalorder %s44, 1
        %s730 = scalar_select %p729, %s44, 1
        %s731 = smul.addr %s730, 4
        %s732 = smul.addr %s731, 4
        %s733 = scalar_lea.vmem %s1, %s732
        %s734 = smul.u32 4, %s45
        %p735 = scmp.lt.s32.totalorder %s44, 1
        %s736 = scalar_select %p735, %s44, 1
        %p737 = scmp.lt.s32.totalorder %s734, 3
        %s738 = scalar_select %p737, %s734, 3
        %s739 = smul.addr %s736, 4
        %s740 = sadd.s32 %s738, %s739
        %s741 = smul.addr %s740, 8
        %s742 = scalar_lea.vmem %s2, %s741
        %s743 = smul.u32 4, %s45
        %s744 = smul.u32 4, %s45
        %p745 = scmp.lt.s32.totalorder %s44, 1
        %s746 = scalar_select %p745, %s44, 1
        %p747 = scmp.lt.s32.totalorder %s744, 3
        %s748 = scalar_select %p747, %s744, 3
        %s749 = smul.addr %s746, 4
        %s750 = sadd.s32 %s748, %s749
        %s751 = smul.addr %s750, 8
        %s752 = scalar_lea.vmem %s3, %s751
        %s753 = smul.u32 4, %s45
        %s754 = smul.u32 4, %s45
        %s755 = smul.u32 4, %s45
        %p757 = scmp.eq.s32.totalorder %s45, 0
        // Predicated region
        $region109: #{tpu_custom_call.1} parent=79 // pred_check
          %p758 = pneg %p757
        $region110: #{tpu_custom_call.1} parent=79 // pred_check_branch
          %760 = sbr.rel (%p758) target = $region112
        $region111: #{tpu_custom_call.1} parent=79 // pred_region
          %v761 = vld [vmem:[%s728] sm:$0xf]
          %v762 = vld [vmem:[%s728 + $0x4] sm:$0xf]
          %v763 = vld [vmem:[%s728 + $0x8] sm:$0xf]
          %v764 = vld [vmem:[%s728 + $0xc] sm:$0xf]
          %v765 = vld [vmem:[%s728 + $0x10] sm:$0xf]
          %v766 = vld [vmem:[%s728 + $0x14] sm:$0xf]
          %v767 = vld [vmem:[%s728 + $0x18] sm:$0xf]
          %v768 = vld [vmem:[%s728 + $0x1c] sm:$0xf]
          %v769 = vld [vmem:[%s728 + $0x20] sm:$0xf]
          %v770 = vld [vmem:[%s728 + $0x24] sm:$0xf]
          %v771 = vld [vmem:[%s728 + $0x28] sm:$0xf]
          %v772 = vld [vmem:[%s728 + $0x2c] sm:$0xf]
          %v773 = vld [vmem:[%s728 + $0x30] sm:$0xf]
          %v774 = vld [vmem:[%s728 + $0x34] sm:$0xf]
          %v775 = vld [vmem:[%s728 + $0x38] sm:$0xf]
          %v776 = vld [vmem:[%s728 + $0x3c] sm:$0xf]
          %v793 = vunpack.c.l.b16 %v761
          %v794 = vunpack.c.l.b16 %v762
          %v795 = vunpack.c.l.b16 %v763
          %v796 = vunpack.c.l.b16 %v764
          %v797 = vunpack.c.l.b16 %v765
          %v798 = vunpack.c.l.b16 %v766
          %v799 = vunpack.c.l.b16 %v767
          %v800 = vunpack.c.l.b16 %v768
          %v801 = vunpack.c.l.b16 %v769
          %v802 = vunpack.c.l.b16 %v770
          %v803 = vunpack.c.l.b16 %v771
          %v804 = vunpack.c.l.b16 %v772
          %v805 = vunpack.c.l.b16 %v773
          %v806 = vunpack.c.l.b16 %v774
          %v807 = vunpack.c.l.b16 %v775
          %v808 = vunpack.c.l.b16 %v776
          %v809 = vpack.c.b16 %v794, %v793
          %v810 = vpack.c.b16 %v796, %v795
          %v811 = vpack.c.b16 %v798, %v797
          %v812 = vpack.c.b16 %v800, %v799
          %v813 = vpack.c.b16 %v802, %v801
          %v814 = vpack.c.b16 %v804, %v803
          %v815 = vpack.c.b16 %v806, %v805
          %v816 = vpack.c.b16 %v808, %v807
          %vm817 = vsmask.f32 256
          %v819 = vshrl.u32 %v809, 16
          %v821 = vrot.slane %v819, 7
          %v822 = vshll.u32 %v809, 16
          %v824 = vor.u32 %v821, %v822
          %v826 = vshrl.u32 %v810, 16
          %v828 = vrot.slane %v826, 7
          %v829 = vshll.u32 %v810, 16
          %v831 = vor.u32 %v828, %v829
          %v832 = vsel %vm817, %v821, %v831
          %v834 = vshrl.u32 %v811, 16
          %v836 = vrot.slane %v834, 7
          %v837 = vshll.u32 %v811, 16
          %v839 = vor.u32 %v836, %v837
          %v840 = vsel %vm817, %v828, %v839
          %v842 = vshrl.u32 %v812, 16
          %v844 = vrot.slane %v842, 7
          %v845 = vshll.u32 %v812, 16
          %v847 = vor.u32 %v844, %v845
          %v848 = vsel %vm817, %v836, %v847
          %v850 = vshrl.u32 %v813, 16
          %v852 = vrot.slane %v850, 7
          %v853 = vshll.u32 %v813, 16
          %v855 = vor.u32 %v852, %v853
          %v856 = vsel %vm817, %v844, %v855
          %v858 = vshrl.u32 %v814, 16
          %v860 = vrot.slane %v858, 7
          %v861 = vshll.u32 %v814, 16
          %v863 = vor.u32 %v860, %v861
          %v864 = vsel %vm817, %v852, %v863
          %v866 = vshrl.u32 %v815, 16
          %v868 = vrot.slane %v866, 7
          %v869 = vshll.u32 %v815, 16
          %v871 = vor.u32 %v868, %v869
          %v872 = vsel %vm817, %v860, %v871
          %v874 = vshrl.u32 %v816, 16
          %v876 = vrot.slane %v874, 7
          %v877 = vshll.u32 %v816, 16
          %v879 = vor.u32 %v876, %v877
          %v880 = vsel %vm817, %v868, %v879
          %vm882 = vcmask 1040384
          %vm883 = vmand %vm882, %vm817
          %v884 = vsel %vm883, 0, %v824
          %vm885 = vsmask.f32 7424
          %v886 = vrot.slane %v822, 1
          %v887 = vor.u32 %v819, %v886
          %v888 = vrot.slane %v829, 1
          %v889 = vsel %vm885, %v887, %v888
          %v890 = vor.u32 %v826, %v888
          %v891 = vrot.slane %v837, 1
          %v892 = vsel %vm885, %v890, %v891
          %v893 = vor.u32 %v834, %v891
          %v894 = vrot.slane %v845, 1
          %v895 = vsel %vm885, %v893, %v894
          %v896 = vor.u32 %v842, %v894
          %v897 = vrot.slane %v853, 1
          %v898 = vsel %vm885, %v896, %v897
          %v899 = vor.u32 %v850, %v897
          %v900 = vrot.slane %v861, 1
          %v901 = vsel %vm885, %v899, %v900
          %v902 = vor.u32 %v858, %v900
          %v903 = vrot.slane %v869, 1
          %v904 = vsel %vm885, %v902, %v903
          %v905 = vor.u32 %v866, %v903
          %v906 = vrot.slane %v877, 1
          %v907 = vsel %vm885, %v905, %v906
          %v908 = vor.u32 %v874, %v906
          %vm910 = vcmask 1047552
          %vm911 = vmand %vm910, %vm885
          %v912 = vsel %vm911, %v908, 0
          %913 = vrot.lane.b32.xlu0 %v809, 32
          %v914 = vpop.permute.xlu0 %913
          %915 = vrot.lane.b32.xlu0 %v810, 32
          %v916 = vpop.permute.xlu0 %915
          %917 = vrot.lane.b32.xlu0 %v811, 32
          %v918 = vpop.permute.xlu0 %917
          %919 = vrot.lane.b32.xlu0 %v812, 32
          %v920 = vpop.permute.xlu0 %919
          %921 = vrot.lane.b32.xlu0 %v813, 32
          %v922 = vpop.permute.xlu0 %921
          %923 = vrot.lane.b32.xlu0 %v814, 32
          %v924 = vpop.permute.xlu0 %923
          %925 = vrot.lane.b32.xlu0 %v815, 32
          %v926 = vpop.permute.xlu0 %925
          %927 = vrot.lane.b32.xlu0 %v816, 32
          %v928 = vpop.permute.xlu0 %927
          %930 = vrot.lane.b32.xlu0 %v889, 64
          %v931 = vpop.permute.xlu0 %930
          %932 = vrot.lane.b32.xlu0 %v892, 64
          %v933 = vpop.permute.xlu0 %932
          %934 = vrot.lane.b32.xlu0 %v895, 64
          %v935 = vpop.permute.xlu0 %934
          %936 = vrot.lane.b32.xlu0 %v898, 64
          %v937 = vpop.permute.xlu0 %936
          %938 = vrot.lane.b32.xlu0 %v901, 64
          %v939 = vpop.permute.xlu0 %938
          %940 = vrot.lane.b32.xlu0 %v904, 64
          %v941 = vpop.permute.xlu0 %940
          %942 = vrot.lane.b32.xlu0 %v907, 64
          %v943 = vpop.permute.xlu0 %942
          %944 = vrot.lane.b32.xlu0 %v912, 64
          %v945 = vpop.permute.xlu0 %944
          %vm946 = vcmask 261120
          %v949 = vsel %vm946, %v884, %v914
          %v952 = vsel %vm946, %v832, %v916
          %v955 = vsel %vm946, %v840, %v918
          %v958 = vsel %vm946, %v848, %v920
          %v961 = vsel %vm946, %v856, %v922
          %v964 = vsel %vm946, %v864, %v924
          %v967 = vsel %vm946, %v872, %v926
          %v970 = vsel %vm946, %v880, %v928
          %vm971 = vcmask 523264
          %v973 = vsel %vm971, %v949, %v931
          %v975 = vsel %vm971, %v952, %v933
          %v977 = vsel %vm971, %v955, %v935
          %v979 = vsel %vm971, %v958, %v937
          %v981 = vsel %vm971, %v961, %v939
          %v983 = vsel %vm971, %v964, %v941
          %v985 = vsel %vm971, %v967, %v943
          %v987 = vsel %vm971, %v970, %v945
          %v988 = vld [vmem:[#allocation8] sm:$0xf]
          %v989 = vld [vmem:[#allocation8 + $0x4] sm:$0xf]
          %v990 = vld [vmem:[#allocation8 + $0x8] sm:$0xf]
          %v991 = vld [vmem:[#allocation8 + $0xc] sm:$0xf]
          %v992 = vld [vmem:[#allocation8 + $0x10] sm:$0xf]
          %v993 = vld [vmem:[#allocation8 + $0x14] sm:$0xf]
          %v994 = vld [vmem:[#allocation8 + $0x18] sm:$0xf]
          %v995 = vld [vmem:[#allocation8 + $0x1c] sm:$0xf]
          %v996 = vld [vmem:[#allocation8 + $0x20] sm:$0xf]
          %v997 = vld [vmem:[#allocation8 + $0x24] sm:$0xf]
          %v998 = vld [vmem:[#allocation8 + $0x28] sm:$0xf]
          %v999 = vld [vmem:[#allocation8 + $0x2c] sm:$0xf]
          %v1000 = vld [vmem:[%s6] sm:$0x1]
          %v1002 = vlaneseq
          %v1003 = vshrl.u32 %v1002, 7
          %v1004 = vsub.s32 0, %v1003
          %v1005 = vrot.slane %v1000, %v1004
          %v1019 = vunpack.c.l.b16 %v988
          %v1020 = vunpack.c.l.b16 %v989
          %v1021 = vunpack.c.l.b16 %v990
          %v1022 = vunpack.c.l.b16 %v991
          %v1023 = vunpack.c.l.b16 %v992
          %v1024 = vunpack.c.l.b16 %v993
          %v1025 = vunpack.c.l.b16 %v994
          %v1026 = vunpack.c.l.b16 %v995
          %v1027 = vunpack.c.l.b16 %v996
          %v1028 = vunpack.c.l.b16 %v997
          %v1029 = vunpack.c.l.b16 %v998
          %v1030 = vunpack.c.l.b16 %v999
          %v1031 = vpack.c.b16 %v1020, %v1019
          %v1032 = vpack.c.b16 %v1022, %v1021
          %v1033 = vpack.c.b16 %v1024, %v1023
          %v1034 = vpack.c.b16 %v1026, %v1025
          %v1035 = vpack.c.b16 %v1028, %v1027
          %v1036 = vpack.c.b16 %v1030, %v1029
          %vm1043 = vcmask 785408
          %v1044 = vsel %vm1043, %v973, 0
          %v1046 = vsel %vm1043, %v975, 0
          %v1048 = vsel %vm1043, %v977, 0
          %v1050 = vsel %vm1043, %v979, 0
          %v1052 = vsel %vm1043, %v981, 0
          %v1054 = vsel %vm1043, %v983, 0
          %v1056 = vsel %vm1043, %v985, 0
          %v1058 = vsel %vm1043, %v987, 0
          %1060 = vmatprep.subr.bf16.mxu0 0
          %1061 = vmatpush1.bf16.msra.mxu0 %v1031
          %1062 = vmatprep.subr.bf16.mxu0 0
          %1063 = vmatpush1.bf16.msra.mxu0 %v1032
          %1064 = vmatprep.subr.bf16.mxu0 0
          %1065 = vmatpush1.bf16.msra.mxu0 %v1033
          %1066 = vmatprep.subr.bf16.mxu0 0
          %1067 = vmatpush1.bf16.msra.mxu0 %v1034
          %1068 = vmatprep.subr.bf16.mxu0 0
          %1069 = vmatpush1.bf16.msra.mxu0 %v1035
          %1070 = vmatprep.subr.bf16.mxu0 0
          %1071 = vmatpush1.bf16.msra.mxu0 %v1036
          %1072 = vmatprep.subr.bf16.mxu0 0
          %1073 = vmatpush1.bf16.msra.mxu0 0
          %1074 = vmatprep.subr.bf16.mxu0 0
          %1075 = vmatpush1.bf16.msra.mxu0 0
          %1076 = vmatprep.subr.bf16.mxu0 0
          %1077 = vmatpush1.bf16.msra.mxu0 0
          %1078 = vmatprep.subr.bf16.mxu0 0
          %1079 = vmatpush1.bf16.msra.mxu0 0
          %1080 = vmatprep.subr.bf16.mxu0 0
          %1081 = vmatpush1.bf16.msra.mxu0 0
          %1082 = vmatprep.subr.bf16.mxu0 0
          %1083 = vmatpush1.bf16.msra.mxu0 0
          %1084 = vmatprep.subr.bf16.mxu0 0
          %1085 = vmatpush1.bf16.msra.mxu0 0
          %1086 = vmatprep.subr.bf16.mxu0 0
          %1087 = vmatpush1.bf16.msra.mxu0 0
          %1088 = vmatprep.subr.bf16.mxu0 0
          %1089 = vmatpush1.bf16.msra.mxu0 0
          %1090 = vmatprep.subr.bf16.mxu0 0
          %1091 = vmatpush1.bf16.msra.mxu0 0
          %1092 = vmatprep.mubr.bf16.mxu0 0
          %1093 = vmatmul.mubr.bf16.gmra.mrb[0].mxu0 %v1044
          %v1094 = vpop.f32.mrb[0].mxu0
          %v1095 = vadd.f32 %v1005, %v1094
          %v1096 = vpop.f32.mrb[0].mxu0
          %v1097 = vpop.f32.mrb[0].mxu0
          %v1098 = vadd.f32 %v1005, %v1097
          %v1099 = vpop.f32.mrb[0].mxu0
          %1100 = vmatprep.mubr.bf16.mxu0 0
          %1101 = vmatmul.mubr.bf16.gmra.mrb[0].mxu0 %v1046
          %v1102 = vpop.f32.mrb[0].mxu0
          %v1103 = vadd.f32 %v1005, %v1102
          %v1104 = vpop.f32.mrb[0].mxu0
          %v1105 = vpop.f32.mrb[0].mxu0
          %v1106 = vadd.f32 %v1005, %v1105
          %v1107 = vpop.f32.mrb[0].mxu0
          %1108 = vmatprep.mubr.bf16.mxu0 0
          %1109 = vmatmul.mubr.bf16.gmra.mrb[0].mxu0 %v1048
          %v1110 = vpop.f32.mrb[0].mxu0
          %v1111 = vadd.f32 %v1005, %v1110
          %v1112 = vpop.f32.mrb[0].mxu0
          %v1113 = vpop.f32.mrb[0].mxu0
          %v1114 = vadd.f32 %v1005, %v1113
          %v1115 = vpop.f32.mrb[0].mxu0
          %1116 = vmatprep.mubr.bf16.mxu0 0
          %1117 = vmatmul.mubr.bf16.gmra.mrb[0].mxu0 %v1050
          %v1118 = vpop.f32.mrb[0].mxu0
          %v1119 = vadd.f32 %v1005, %v1118
          %v1120 = vpop.f32.mrb[0].mxu0
          %v1121 = vpop.f32.mrb[0].mxu0
          %v1122 = vadd.f32 %v1005, %v1121
          %v1123 = vpop.f32.mrb[0].mxu0
          %1124 = vmatprep.mubr.bf16.mxu0 0
          %1125 = vmatmul.mubr.bf16.gmra.mrb[0].mxu0 %v1052
          %v1126 = vpop.f32.mrb[0].mxu0
          %v1127 = vadd.f32 %v1005, %v1126
          %v1128 = vpop.f32.mrb[0].mxu0
          %v1129 = vpop.f32.mrb[0].mxu0
          %v1130 = vadd.f32 %v1005, %v1129
          %v1131 = vpop.f32.mrb[0].mxu0
          %1132 = vmatprep.mubr.bf16.mxu0 0
          %1133 = vmatmul.mubr.bf16.gmra.mrb[0].mxu0 %v1054
          %v1134 = vpop.f32.mrb[0].mxu0
          %v1135 = vadd.f32 %v1005, %v1134
          %v1136 = vpop.f32.mrb[0].mxu0
          %v1137 = vpop.f32.mrb[0].mxu0
          %v1138 = vadd.f32 %v1005, %v1137
          %v1139 = vpop.f32.mrb[0].mxu0
          %1140 = vmatprep.mubr.bf16.mxu0 0
          %1141 = vmatmul.mubr.bf16.gmra.mrb[0].mxu0 %v1056
          %v1142 = vpop.f32.mrb[0].mxu0
          %v1143 = vadd.f32 %v1005, %v1142
          %v1144 = vpop.f32.mrb[0].mxu0
          %v1145 = vpop.f32.mrb[0].mxu0
          %v1146 = vadd.f32 %v1005, %v1145
          %v1147 = vpop.f32.mrb[0].mxu0
          %1148 = vmatprep.mubr.bf16.mxu0 0
          %1149 = vmatmul.mubr.bf16.gmra.mrb[0].mxu0 %v1058
          %v1150 = vpop.f32.mrb[0].mxu0
          %v1151 = vadd.f32 %v1005, %v1150
          %v1152 = vpop.f32.mrb[0].mxu0
          %v1153 = vpop.f32.mrb[0].mxu0
          %v1154 = vadd.f32 %v1005, %v1153
          %v1155 = vpop.f32.mrb[0].mxu0
          %1156 = vdwg.mxu0
          %v1157 = vmax.f32 %v1095, 0.0
          %v1158 = vmax.f32 %v1098, 0.0
          %v1159 = vmax.f32 %v1103, 0.0
          %v1160 = vmax.f32 %v1106, 0.0
          %v1161 = vmax.f32 %v1111, 0.0
          %v1162 = vmax.f32 %v1114, 0.0
          %v1163 = vmax.f32 %v1119, 0.0
          %v1164 = vmax.f32 %v1122, 0.0
          %v1165 = vmax.f32 %v1127, 0.0
          %v1166 = vmax.f32 %v1130, 0.0
          %v1167 = vmax.f32 %v1135, 0.0
          %v1168 = vmax.f32 %v1138, 0.0
          %v1169 = vmax.f32 %v1143, 0.0
          %v1170 = vmax.f32 %v1146, 0.0
          %v1171 = vmax.f32 %v1151, 0.0
          %v1172 = vmax.f32 %v1154, 0.0
          %v1173 = vpack.c.bf16 %v1158, %v1157
          %v1174 = vpack.c.bf16 %v1160, %v1159
          %v1175 = vpack.c.bf16 %v1162, %v1161
          %v1176 = vpack.c.bf16 %v1164, %v1163
          %v1177 = vpack.c.bf16 %v1166, %v1165
          %v1178 = vpack.c.bf16 %v1168, %v1167
          %v1179 = vpack.c.bf16 %v1170, %v1169
          %v1180 = vpack.c.bf16 %v1172, %v1171
          %v1181 = vld [vmem:[%s7] sm:$0xf]
          %v1182 = vld [vmem:[%s7 + $0x4] sm:$0xf]
          %v1183 = vld [vmem:[%s7 + $0x8] sm:$0xf]
          %v1184 = vld [vmem:[%s7 + $0xc] sm:$0xf]
          %v1185 = vld [vmem:[%s7 + $0x10] sm:$0xf]
          %v1186 = vld [vmem:[%s7 + $0x14] sm:$0xf]
          %v1187 = vld [vmem:[%s7 + $0x18] sm:$0xf]
          %v1188 = vld [vmem:[%s7 + $0x1c] sm:$0xf]
          %v1189 = vld [vmem:[%s7 + $0x20] sm:$0xf]
          %v1190 = vld [vmem:[%s7 + $0x24] sm:$0xf]
          %v1191 = vld [vmem:[%s7 + $0x28] sm:$0xf]
          %v1192 = vld [vmem:[%s7 + $0x2c] sm:$0xf]
          %v1193 = vld [vmem:[%s7 + $0x30] sm:$0xf]
          %v1194 = vld [vmem:[%s7 + $0x34] sm:$0xf]
          %v1195 = vld [vmem:[%s7 + $0x38] sm:$0xf]
          %v1196 = vld [vmem:[%s7 + $0x3c] sm:$0xf]
          %v1197 = vld [vmem:[#allocation10] sm:$0x1]
          %v1199 = vlaneseq
          %v1200 = vshrl.u32 %v1199, 7
          %v1201 = vsub.s32 0, %v1200
          %v1202 = vrot.slane %v1197, %v1201
          %v1220 = vunpack.c.l.b16 %v1181
          %v1221 = vunpack.c.l.b16 %v1182
          %v1222 = vunpack.c.l.b16 %v1183
          %v1223 = vunpack.c.l.b16 %v1184
          %v1224 = vunpack.c.l.b16 %v1185
          %v1225 = vunpack.c.l.b16 %v1186
          %v1226 = vunpack.c.l.b16 %v1187
          %v1227 = vunpack.c.l.b16 %v1188
          %v1228 = vunpack.c.l.b16 %v1189
          %v1229 = vunpack.c.l.b16 %v1190
          %v1230 = vunpack.c.l.b16 %v1191
          %v1231 = vunpack.c.l.b16 %v1192
          %v1232 = vunpack.c.l.b16 %v1193
          %v1233 = vunpack.c.l.b16 %v1194
          %v1234 = vunpack.c.l.b16 %v1195
          %v1235 = vunpack.c.l.b16 %v1196
          %v1236 = vpack.c.b16 %v1221, %v1220
          %v1237 = vpack.c.b16 %v1223, %v1222
          %v1238 = vpack.c.b16 %v1225, %v1224
          %v1239 = vpack.c.b16 %v1227, %v1226
          %v1240 = vpack.c.b16 %v1229, %v1228
          %v1241 = vpack.c.b16 %v1231, %v1230
          %v1242 = vpack.c.b16 %v1233, %v1232
          %v1243 = vpack.c.b16 %v1235, %v1234
          %1252 = vmatprep.subr.bf16.mxu0 0
          %1253 = vmatpush1.bf16.msra.mxu0 %v1236
          %1254 = vmatprep.subr.bf16.mxu0 0
          %1255 = vmatpush1.bf16.msra.mxu0 %v1237
          %1256 = vmatprep.subr.bf16.mxu0 0
          %1257 = vmatpush1.bf16.msra.mxu0 %v1238
          %1258 = vmatprep.subr.bf16.mxu0 0
          %1259 = vmatpush1.bf16.msra.mxu0 %v1239
          %1260 = vmatprep.subr.bf16.mxu0 0
          %1261 = vmatpush1.bf16.msra.mxu0 %v1240
          %1262 = vmatprep.subr.bf16.mxu0 0
          %1263 = vmatpush1.bf16.msra.mxu0 %v1241
          %1264 = vmatprep.subr.bf16.mxu0 0
          %1265 = vmatpush1.bf16.msra.mxu0 %v1242
          %1266 = vmatprep.subr.bf16.mxu0 0
          %1267 = vmatpush1.bf16.msra.mxu0 %v1243
          %1268 = vmatprep.subr.bf16.mxu0 0
          %1269 = vmatpush1.bf16.msra.mxu0 0
          %1270 = vmatprep.subr.bf16.mxu0 0
          %1271 = vmatpush1.bf16.msra.mxu0 0
          %1272 = vmatprep.subr.bf16.mxu0 0
          %1273 = vmatpush1.bf16.msra.mxu0 0
          %1274 = vmatprep.subr.bf16.mxu0 0
          %1275 = vmatpush1.bf16.msra.mxu0 0
          %1276 = vmatprep.subr.bf16.mxu0 0
          %1277 = vmatpush1.bf16.msra.mxu0 0
          %1278 = vmatprep.subr.bf16.mxu0 0
          %1279 = vmatpush1.bf16.msra.mxu0 0
          %1280 = vmatprep.subr.bf16.mxu0 0
          %1281 = vmatpush1.bf16.msra.mxu0 0
          %1282 = vmatprep.subr.bf16.mxu0 0
          %1283 = vmatpush1.bf16.msra.mxu0 0
          %1284 = vmatprep.mubr.bf16.mxu0 0
          %1285 = vmatmul.mubr.bf16.gmra.mrb[0].mxu0 %v1173
          %v1286 = vpop.f32.mrb[0].mxu0
          %v1287 = vadd.f32 %v1202, %v1286
          %v1288 = vpop.f32.mrb[0].mxu0
          %v1289 = vpop.f32.mrb[0].mxu0
          %v1290 = vadd.f32 %v1202, %v1289
          %v1291 = vpop.f32.mrb[0].mxu0
          %1292 = vmatprep.mubr.bf16.mxu0 0
          %1293 = vmatmul.mubr.bf16.gmra.mrb[0].mxu0 %v1174
          %v1294 = vpop.f32.mrb[0].mxu0
          %v1295 = vadd.f32 %v1202, %v1294
          %v1296 = vpop.f32.mrb[0].mxu0
          %v1297 = vpop.f32.mrb[0].mxu0
          %v1298 = vadd.f32 %v1202, %v1297
          %v1299 = vpop.f32.mrb[0].mxu0
          %1300 = vmatprep.mubr.bf16.mxu0 0
          %1301 = vmatmul.mubr.bf16.gmra.mrb[0].mxu0 %v1175
          %v1302 = vpop.f32.mrb[0].mxu0
          %v1303 = vadd.f32 %v1202, %v1302
          %v1304 = vpop.f32.mrb[0].mxu0
          %v1305 = vpop.f32.mrb[0].mxu0
          %v1306 = vadd.f32 %v1202, %v1305
          %v1307 = vpop.f32.mrb[0].mxu0
          %1308 = vmatprep.mubr.bf16.mxu0 0
          %1309 = vmatmul.mubr.bf16.gmra.mrb[0].mxu0 %v1176
          %v1310 = vpop.f32.mrb[0].mxu0
          %v1311 = vadd.f32 %v1202, %v1310
          %v1312 = vpop.f32.mrb[0].mxu0
          %v1313 = vpop.f32.mrb[0].mxu0
          %v1314 = vadd.f32 %v1202, %v1313
          %v1315 = vpop.f32.mrb[0].mxu0
          %1316 = vmatprep.mubr.bf16.mxu0 0
          %1317 = vmatmul.mubr.bf16.gmra.mrb[0].mxu0 %v1177
          %v1318 = vpop.f32.mrb[0].mxu0
          %v1319 = vadd.f32 %v1202, %v1318
          %v1320 = vpop.f32.mrb[0].mxu0
          %v1321 = vpop.f32.mrb[0].mxu0
          %v1322 = vadd.f32 %v1202, %v1321
          %v1323 = vpop.f32.mrb[0].mxu0
          %1324 = vmatprep.mubr.bf16.mxu0 0
          %1325 = vmatmul.mubr.bf16.gmra.mrb[0].mxu0 %v1178
          %v1326 = vpop.f32.mrb[0].mxu0
          %v1327 = vadd.f32 %v1202, %v1326
          %v1328 = vpop.f32.mrb[0].mxu0
          %v1329 = vpop.f32.mrb[0].mxu0
          %v1330 = vadd.f32 %v1202, %v1329
          %v1331 = vpop.f32.mrb[0].mxu0
          %1332 = vmatprep.mubr.bf16.mxu0 0
          %1333 = vmatmul.mubr.bf16.gmra.mrb[0].mxu0 %v1179
          %v1334 = vpop.f32.mrb[0].mxu0
          %v1335 = vadd.f32 %v1202, %v1334
          %v1336 = vpop.f32.mrb[0].mxu0
          %v1337 = vpop.f32.mrb[0].mxu0
          %v1338 = vadd.f32 %v1202, %v1337
          %v1339 = vpop.f32.mrb[0].mxu0
          %1340 = vmatprep.mubr.bf16.mxu0 0
          %1341 = vmatmul.mubr.bf16.gmra.mrb[0].mxu0 %v1180
          %v1342 = vpop.f32.mrb[0].mxu0
          %v1343 = vadd.f32 %v1202, %v1342
          %v1344 = vpop.f32.mrb[0].mxu0
          %v1345 = vpop.f32.mrb[0].mxu0
          %v1346 = vadd.f32 %v1202, %v1345
          %v1347 = vpop.f32.mrb[0].mxu0
          %1348 = vdwg.mxu0
          %v1349 = vpack.c.bf16 %v1290, %v1287
          %v1350 = vpack.c.bf16 %v1298, %v1295
          %v1351 = vpack.c.bf16 %v1306, %v1303
          %v1352 = vpack.c.bf16 %v1314, %v1311
          %v1353 = vpack.c.bf16 %v1322, %v1319
          %v1354 = vpack.c.bf16 %v1330, %v1327
          %v1355 = vpack.c.bf16 %v1338, %v1335
          %v1356 = vpack.c.bf16 %v1346, %v1343
          %1357 = vst [vmem:[#allocation2] sm:$0xff] %v1349
          %1358 = vst [vmem:[#allocation2 + $0x8] sm:$0xff] %v1350
          %1359 = vst [vmem:[#allocation2 + $0x10] sm:$0xff] %v1351
          %1360 = vst [vmem:[#allocation2 + $0x18] sm:$0xff] %v1352
          %1361 = vst [vmem:[#allocation2 + $0x20] sm:$0xff] %v1353
          %1362 = vst [vmem:[#allocation2 + $0x28] sm:$0xff] %v1354
          %1363 = vst [vmem:[#allocation2 + $0x30] sm:$0xff] %v1355
          %1364 = vst [vmem:[#allocation2 + $0x38] sm:$0xff] %v1356
          %v1365 = vmul.f32 %v1287, %v1287
          %v1366 = vmul.f32 %v1290, %v1290
          %v1367 = vmul.f32 %v1295, %v1295
          %v1368 = vmul.f32 %v1298, %v1298
          %v1369 = vmul.f32 %v1303, %v1303
          %v1370 = vmul.f32 %v1306, %v1306
          %v1371 = vmul.f32 %v1311, %v1311
          %v1372 = vmul.f32 %v1314, %v1314
          %v1373 = vmul.f32 %v1319, %v1319
          %v1374 = vmul.f32 %v1322, %v1322
          %v1375 = vmul.f32 %v1327, %v1327
          %v1376 = vmul.f32 %v1330, %v1330
          %v1377 = vmul.f32 %v1335, %v1335
          %v1378 = vmul.f32 %v1338, %v1338
          %v1379 = vmul.f32 %v1343, %v1343
          %v1380 = vmul.f32 %v1346, %v1346
          %1381 = vmatprep.subr.mxu0 0.0
          %1382 = vmatpush1.xpose.msra.mxu0 %v1365
          %1383 = vmatprep.subr.mxu0 0.0
          %1384 = vmatpush1.xpose.msra.mxu0 %v1366
          %1385 = vmatprep.subr.mxu0 0.0
          %1386 = vmatpush1.xpose.msra.mxu0 %v1367
          %1387 = vmatprep.subr.mxu0 0.0
          %1388 = vmatpush1.xpose.msra.mxu0 %v1368
          %1389 = vmatprep.subr.mxu0 0.0
          %1390 = vmatpush1.xpose.msra.mxu0 %v1369
          %1391 = vmatprep.subr.mxu0 0.0
          %1392 = vmatpush1.xpose.msra.mxu0 %v1370
          %1393 = vmatprep.subr.mxu0 0.0
          %1394 = vmatpush1.xpose.msra.mxu0 %v1371
          %1395 = vmatprep.subr.mxu0 0.0
          %1396 = vmatpush1.xpose.msra.mxu0 %v1372
          %1397 = vmatprep.subr.mxu0 0.0
          %1398 = vmatpush1.xpose.msra.mxu0 %v1373
          %1399 = vmatprep.subr.mxu0 0.0
          %1400 = vmatpush1.xpose.msra.mxu0 %v1374
          %1401 = vmatprep.subr.mxu0 0.0
          %1402 = vmatpush1.xpose.msra.mxu0 %v1375
          %1403 = vmatprep.subr.mxu0 0.0
          %1404 = vmatpush1.xpose.msra.mxu0 %v1376
          %1405 = vmatprep.subr.mxu0 0.0
          %1406 = vmatpush1.xpose.msra.mxu0 %v1377
          %1407 = vmatprep.subr.mxu0 0.0
          %1408 = vmatpush1.xpose.msra.mxu0 %v1378
          %1409 = vmatprep.subr.mxu0 0.0
          %1410 = vmatpush1.xpose.msra.mxu0 %v1379
          %1411 = vmatprep.subr.mxu0 0.0
          %1412 = vmatpush1.xpose.msra.mxu0 %v1380
          %1413 = vmatprep.subr.mxu0 0.0
          %1414 = vmatpush1.xpose.msra.mxu0 0.0
          %1415 = vmatprep.subr.mxu0 0.0
          %1416 = vmatpush1.xpose.msra.mxu0 0.0
          %1417 = vmatprep.subr.mxu0 0.0
          %1418 = vmatpush1.xpose.msra.mxu0 0.0
          %1419 = vmatprep.subr.mxu0 0.0
          %1420 = vmatpush1.xpose.msra.mxu0 0.0
          %1421 = vmatprep.subr.mxu0 0.0
          %1422 = vmatpush1.xpose.msra.mxu0 0.0
          %1423 = vmatprep.subr.mxu0 0.0
          %1424 = vmatpush1.xpose.msra.mxu0 0.0
          %1425 = vmatprep.subr.mxu0 0.0
          %1426 = vmatpush1.xpose.msra.mxu0 0.0
          %1427 = vmatprep.subr.mxu0 0.0
          %1428 = vmatpush1.xpose.msra.mxu0 0.0
          %1429 = vmatprep.subr.mxu0 0.0
          %1430 = vmatpush1.xpose.msra.mxu0 0.0
          %1431 = vmatprep.subr.mxu0 0.0
          %1432 = vmatpush1.xpose.msra.mxu0 0.0
          %1433 = vmatprep.subr.mxu0 0.0
          %1434 = vmatpush1.xpose.msra.mxu0 0.0
          %1435 = vmatprep.subr.mxu0 0.0
          %1436 = vmatpush1.xpose.msra.mxu0 0.0
          %1437 = vmatprep.subr.mxu0 0.0
          %1438 = vmatpush1.xpose.msra.mxu0 0.0
          %1439 = vmatprep.subr.mxu0 0.0
          %1440 = vmatpush1.xpose.msra.mxu0 0.0
          %1441 = vmatprep.subr.mxu0 0.0
          %1442 = vmatpush1.xpose.msra.mxu0 0.0
          %1443 = vmatprep.subr.mxu0 0.0
          %1444 = vmatpush1.xpose.msra.mxu0 0.0
          %1445 = vmatprep.mubr.f32.mxu0 0.0
          %1446 = vmatmul.mubr.f32.gmra.mrb[0].mxu0 -0.0005
          %v1447 = vpop.f32.mrb[0].mxu0
          %v1448 = vadd.f32 0.0, %v1447
          %v1449 = vpop.f32.mrb[0].mxu0
          %1450 = vdwg.mxu0
          %v1451 = vlaneseq
          %v1452 = vand.u32 %v1451, 127
          %vm1453 = vcmp.lt.s32.totalorder %v1452, 8
          %v1454 = vsel %vm1453, %v1448, -1e+30
          %1455 = vst [vmem:[#allocation3] sm:$0x1] %v1454
          %v1456 = vld [vmem:[%s733] sm:$0xf]
          %v1457 = vld [vmem:[%s733 + $0x4] sm:$0xf]
          %v1458 = vld [vmem:[%s733 + $0x8] sm:$0xf]
          %v1459 = vld [vmem:[%s733 + $0xc] sm:$0xf]
          %v1464 = vunpack.c.l.b16 %v1456
          %v1465 = vunpack.c.l.b16 %v1457
          %v1466 = vunpack.c.l.b16 %v1458
          %v1467 = vunpack.c.l.b16 %v1459
          %v1468 = vpack.c.b16 %v1465, %v1464
          %v1469 = vpack.c.b16 %v1467, %v1466
          %v1471 = vshrl.u32 %v1468, 16
          %v1473 = vrot.slane %v1471, 7
          %v1474 = vshll.u32 %v1468, 16
          %v1476 = vor.u32 %v1473, %v1474
          %v1478 = vshrl.u32 %v1469, 16
          %v1480 = vrot.slane %v1478, 7
          %v1481 = vshll.u32 %v1469, 16
          %v1483 = vor.u32 %v1480, %v1481
          %v1484 = vsel %vm817, %v1473, %v1483
          %v1486 = vsel %vm883, 0, %v1476
          %v1487 = vrot.slane %v1474, 1
          %v1488 = vor.u32 %v1471, %v1487
          %v1489 = vrot.slane %v1481, 1
          %v1490 = vsel %vm885, %v1488, %v1489
          %v1491 = vor.u32 %v1478, %v1489
          %v1493 = vsel %vm911, %v1491, 0
          %1494 = vrot.lane.b32.xlu0 %v1468, 16
          %v1495 = vpop.permute.xlu0 %1494
          %1496 = vrot.lane.b32.xlu0 %v1469, 16
          %v1497 = vpop.permute.xlu0 %1496
          %1499 = vrot.lane.b32.xlu0 %v1490, 32
          %v1500 = vpop.permute.xlu0 %1499
          %1501 = vrot.lane.b32.xlu0 %v1493, 32
          %v1502 = vpop.permute.xlu0 %1501
          %vm1503 = vcmask 130048
          %v1506 = vsel %vm1503, %v1486, %v1495
          %v1509 = vsel %vm1503, %v1484, %v1497
          %v1511 = vsel %vm946, %v1506, %v1500
          %v1513 = vsel %vm946, %v1509, %v1502
          %v1514 = vld [vmem:[#allocation11] sm:$0xf]
          %v1515 = vld [vmem:[#allocation11 + $0x4] sm:$0xf]
          %v1516 = vld [vmem:[#allocation11 + $0x8] sm:$0xf]
          %v1517 = vld [vmem:[#allocation11 + $0xc] sm:$0xf]
          %v1518 = vld [vmem:[#allocation11 + $0x10] sm:$0xf]
          %v1519 = vld [vmem:[#allocation11 + $0x14] sm:$0xf]
          %v1520 = vld [vmem:[#allocation13] sm:$0x1]
          %v1522 = vlaneseq
          %v1523 = vshrl.u32 %v1522, 7
          %v1524 = vsub.s32 0, %v1523
          %v1525 = vrot.slane %v1520, %v1524
          %v1533 = vunpack.c.l.b16 %v1514
          %v1534 = vunpack.c.l.b16 %v1515
          %v1535 = vunpack.c.l.b16 %v1516
          %v1536 = vunpack.c.l.b16 %v1517
          %v1537 = vunpack.c.l.b16 %v1518
          %v1538 = vunpack.c.l.b16 %v1519
          %v1539 = vpack.c.b16 %v1534, %v1533
          %v1540 = vpack.c.b16 %v1536, %v1535
          %v1541 = vpack.c.b16 %v1538, %v1537
          %vm1545 = vcmask 392192
          %v1546 = vsel %vm1545, %v1511, 0
          %v1548 = vsel %vm1545, %v1513, 0
          %1550 = vmatprep.subr.bf16.mxu0 0
          %1551 = vmatpush1.bf16.msra.mxu0 %v1539
          %1552 = vmatprep.subr.bf16.mxu0 0
          %1553 = vmatpush1.bf16.msra.mxu0 %v1540
          %1554 = vmatprep.subr.bf16.mxu0 0
          %1555 = vmatpush1.bf16.msra.mxu0 %v1541
          %1556 = vmatprep.subr.bf16.mxu0 0
          %1557 = vmatpush1.bf16.msra.mxu0 0
          %1558 = vmatprep.subr.bf16.mxu0 0
          %1559 = vmatpush1.bf16.msra.mxu0 0
          %1560 = vmatprep.subr.bf16.mxu0 0
          %1561 = vmatpush1.bf16.msra.mxu0 0
          %1562 = vmatprep.subr.bf16.mxu0 0
          %1563 = vmatpush1.bf16.msra.mxu0 0
          %1564 = vmatprep.subr.bf16.mxu0 0
          %1565 = vmatpush1.bf16.msra.mxu0 0
          %1566 = vmatprep.subr.bf16.mxu0 0
          %1567 = vmatpush1.bf16.msra.mxu0 0
          %1568 = vmatprep.subr.bf16.mxu0 0
          %1569 = vmatpush1.bf16.msra.mxu0 0
          %1570 = vmatprep.subr.bf16.mxu0 0
          %1571 = vmatpush1.bf16.msra.mxu0 0
          %1572 = vmatprep.subr.bf16.mxu0 0
          %1573 = vmatpush1.bf16.msra.mxu0 0
          %1574 = vmatprep.subr.bf16.mxu0 0
          %1575 = vmatpush1.bf16.msra.mxu0 0
          %1576 = vmatprep.subr.bf16.mxu0 0
          %1577 = vmatpush1.bf16.msra.mxu0 0
          %1578 = vmatprep.subr.bf16.mxu0 0
          %1579 = vmatpush1.bf16.msra.mxu0 0
          %1580 = vmatprep.subr.bf16.mxu0 0
          %1581 = vmatpush1.bf16.msra.mxu0 0
          %1582 = vmatprep.mubr.bf16.mxu0 0
          %1583 = vmatmul.mubr.bf16.gmra.mrb[0].mxu0 %v1546
          %v1584 = vpop.f32.mrb[0].mxu0
          %v1585 = vadd.f32 %v1525, %v1584
          %v1586 = vpop.f32.mrb[0].mxu0
          %v1587 = vpop.f32.mrb[0].mxu0
          %v1588 = vadd.f32 %v1525, %v1587
          %v1589 = vpop.f32.mrb[0].mxu0
          %1590 = vmatprep.mubr.bf16.mxu0 0
          %1591 = vmatmul.mubr.bf16.gmra.mrb[0].mxu0 %v1548
          %v1592 = vpop.f32.mrb[0].mxu0
          %v1593 = vadd.f32 %v1525, %v1592
          %v1594 = vpop.f32.mrb[0].mxu0
          %v1595 = vpop.f32.mrb[0].mxu0
          %v1596 = vadd.f32 %v1525, %v1595
          %v1597 = vpop.f32.mrb[0].mxu0
          %1598 = vdwg.mxu0
          %v1599 = vmax.f32 %v1585, 0.0
          %v1600 = vmax.f32 %v1588, 0.0
          %v1601 = vmax.f32 %v1593, 0.0
          %v1602 = vmax.f32 %v1596, 0.0
          %v1603 = vpack.c.bf16 %v1600, %v1599
          %v1604 = vpack.c.bf16 %v1602, %v1601
          %v1605 = vld [vmem:[#allocation14] sm:$0xf]
          %v1606 = vld [vmem:[#allocation14 + $0x4] sm:$0xf]
          %v1607 = vld [vmem:[#allocation14 + $0x8] sm:$0xf]
          %v1608 = vld [vmem:[#allocation14 + $0xc] sm:$0xf]
          %v1609 = vld [vmem:[#allocation14 + $0x10] sm:$0xf]
          %v1610 = vld [vmem:[#allocation14 + $0x14] sm:$0xf]
          %v1611 = vld [vmem:[#allocation14 + $0x18] sm:$0xf]
          %v1612 = vld [vmem:[#allocation14 + $0x1c] sm:$0xf]
          %v1613 = vld [vmem:[#allocation14 + $0x20] sm:$0xf]
          %v1614 = vld [vmem:[#allocation14 + $0x24] sm:$0xf]
          %v1615 = vld [vmem:[#allocation14 + $0x28] sm:$0xf]
          %v1616 = vld [vmem:[#allocation14 + $0x2c] sm:$0xf]
          %v1617 = vld [vmem:[#allocation14 + $0x30] sm:$0xf]
          %v1618 = vld [vmem:[#allocation14 + $0x34] sm:$0xf]
          %v1619 = vld [vmem:[#allocation14 + $0x38] sm:$0xf]
          %v1620 = vld [vmem:[#allocation14 + $0x3c] sm:$0xf]
          %v1621 = vld [vmem:[#allocation16] sm:$0x1]
          %v1623 = vlaneseq
          %v1624 = vshrl.u32 %v1623, 7
          %v1625 = vsub.s32 0, %v1624
          %v1626 = vrot.slane %v1621, %v1625
          %v1644 = vunpack.c.l.b16 %v1605
          %v1645 = vunpack.c.l.b16 %v1606
          %v1646 = vunpack.c.l.b16 %v1607
          %v1647 = vunpack.c.l.b16 %v1608
          %v1648 = vunpack.c.l.b16 %v1609
          %v1649 = vunpack.c.l.b16 %v1610
          %v1650 = vunpack.c.l.b16 %v1611
          %v1651 = vunpack.c.l.b16 %v1612
          %v1652 = vunpack.c.l.b16 %v1613
          %v1653 = vunpack.c.l.b16 %v1614
          %v1654 = vunpack.c.l.b16 %v1615
          %v1655 = vunpack.c.l.b16 %v1616
          %v1656 = vunpack.c.l.b16 %v1617
          %v1657 = vunpack.c.l.b16 %v1618
          %v1658 = vunpack.c.l.b16 %v1619
          %v1659 = vunpack.c.l.b16 %v1620
          %v1660 = vpack.c.b16 %v1645, %v1644
          %v1661 = vpack.c.b16 %v1647, %v1646
          %v1662 = vpack.c.b16 %v1649, %v1648
          %v1663 = vpack.c.b16 %v1651, %v1650
          %v1664 = vpack.c.b16 %v1653, %v1652
          %v1665 = vpack.c.b16 %v1655, %v1654
          %v1666 = vpack.c.b16 %v1657, %v1656
          %v1667 = vpack.c.b16 %v1659, %v1658
          %1676 = vmatprep.subr.bf16.mxu0 0
          %1677 = vmatpush1.bf16.msra.mxu0 %v1660
          %1678 = vmatprep.subr.bf16.mxu0 0
          %1679 = vmatpush1.bf16.msra.mxu0 %v1661
          %1680 = vmatprep.subr.bf16.mxu0 0
          %1681 = vmatpush1.bf16.msra.mxu0 %v1662
          %1682 = vmatprep.subr.bf16.mxu0 0
          %1683 = vmatpush1.bf16.msra.mxu0 %v1663
          %1684 = vmatprep.subr.bf16.mxu0 0
          %1685 = vmatpush1.bf16.msra.mxu0 %v1664
          %1686 = vmatprep.subr.bf16.mxu0 0
          %1687 = vmatpush1.bf16.msra.mxu0 %v1665
          %1688 = vmatprep.subr.bf16.mxu0 0
          %1689 = vmatpush1.bf16.msra.mxu0 %v1666
          %1690 = vmatprep.subr.bf16.mxu0 0
          %1691 = vmatpush1.bf16.msra.mxu0 %v1667
          %1692 = vmatprep.subr.bf16.mxu0 0
          %1693 = vmatpush1.bf16.msra.mxu0 0
          %1694 = vmatprep.subr.bf16.mxu0 0
          %1695 = vmatpush1.bf16.msra.mxu0 0
          %1696 = vmatprep.subr.bf16.mxu0 0
          %1697 = vmatpush1.bf16.msra.mxu0 0
          %1698 = vmatprep.subr.bf16.mxu0 0
          %1699 = vmatpush1.bf16.msra.mxu0 0
          %1700 = vmatprep.subr.bf16.mxu0 0
          %1701 = vmatpush1.bf16.msra.mxu0 0
          %1702 = vmatprep.subr.bf16.mxu0 0
          %1703 = vmatpush1.bf16.msra.mxu0 0
          %1704 = vmatprep.subr.bf16.mxu0 0
          %1705 = vmatpush1.bf16.msra.mxu0 0
          %1706 = vmatprep.subr.bf16.mxu0 0
          %1707 = vmatpush1.bf16.msra.mxu0 0
          %1708 = vmatprep.mubr.bf16.mxu0 0
          %1709 = vmatmul.mubr.bf16.gmra.mrb[0].mxu0 %v1603
          %v1710 = vpop.f32.mrb[0].mxu0
          %v1711 = vadd.f32 %v1626, %v1710
          %v1712 = vpop.f32.mrb[0].mxu0
          %v1713 = vpop.f32.mrb[0].mxu0
          %v1714 = vadd.f32 %v1626, %v1713
          %v1715 = vpop.f32.mrb[0].mxu0
          %1716 = vmatprep.mubr.bf16.mxu0 0
          %1717 = vmatmul.mubr.bf16.gmra.mrb[0].mxu0 %v1604
          %v1718 = vpop.f32.mrb[0].mxu0
          %v1719 = vadd.f32 %v1626, %v1718
          %v1720 = vpop.f32.mrb[0].mxu0
          %v1721 = vpop.f32.mrb[0].mxu0
          %v1722 = vadd.f32 %v1626, %v1721
          %v1723 = vpop.f32.mrb[0].mxu0
          %1724 = vdwg.mxu0
          %v1725 = vmax.f32 %v1711, 0.0
          %v1726 = vmax.f32 %v1714, 0.0
          %v1727 = vmax.f32 %v1719, 0.0
          %v1728 = vmax.f32 %v1722, 0.0
          %v1729 = vpack.c.bf16 %v1726, %v1725
          %v1730 = vpack.c.bf16 %v1728, %v1727
          %v1731 = vld [vmem:[%s13] sm:$0xf]
          %v1732 = vld [vmem:[%s13 + $0x4] sm:$0xf]
          %v1733 = vld [vmem:[%s13 + $0x8] sm:$0xf]
          %v1734 = vld [vmem:[%s13 + $0xc] sm:$0xf]
          %v1735 = vld [vmem:[%s13 + $0x10] sm:$0xf]
          %v1736 = vld [vmem:[%s13 + $0x14] sm:$0xf]
          %v1737 = vld [vmem:[%s13 + $0x18] sm:$0xf]
          %v1738 = vld [vmem:[%s13 + $0x1c] sm:$0xf]
          %v1739 = vld [vmem:[%s13 + $0x20] sm:$0xf]
          %v1740 = vld [vmem:[%s13 + $0x24] sm:$0xf]
          %v1741 = vld [vmem:[%s13 + $0x28] sm:$0xf]
          %v1742 = vld [vmem:[%s13 + $0x2c] sm:$0xf]
          %v1743 = vld [vmem:[%s13 + $0x30] sm:$0xf]
          %v1744 = vld [vmem:[%s13 + $0x34] sm:$0xf]
          %v1745 = vld [vmem:[%s13 + $0x38] sm:$0xf]
          %v1746 = vld [vmem:[%s13 + $0x3c] sm:$0xf]
          %v1747 = vld [vmem:[%s14] sm:$0x1]
          %v1749 = vlaneseq
          %v1750 = vshrl.u32 %v1749, 7
          %v1751 = vsub.s32 0, %v1750
          %v1752 = vrot.slane %v1747, %v1751
          %v1770 = vunpack.c.l.b16 %v1731
          %v1771 = vunpack.c.l.b16 %v1732
          %v1772 = vunpack.c.l.b16 %v1733
          %v1773 = vunpack.c.l.b16 %v1734
          %v1774 = vunpack.c.l.b16 %v1735
          %v1775 = vunpack.c.l.b16 %v1736
          %v1776 = vunpack.c.l.b16 %v1737
          %v1777 = vunpack.c.l.b16 %v1738
          %v1778 = vunpack.c.l.b16 %v1739
          %v1779 = vunpack.c.l.b16 %v1740
          %v1780 = vunpack.c.l.b16 %v1741
          %v1781 = vunpack.c.l.b16 %v1742
          %v1782 = vunpack.c.l.b16 %v1743
          %v1783 = vunpack.c.l.b16 %v1744
          %v1784 = vunpack.c.l.b16 %v1745
          %v1785 = vunpack.c.l.b16 %v1746
          %v1786 = vpack.c.b16 %v1771, %v1770
          %v1787 = vpack.c.b16 %v1773, %v1772
          %v1788 = vpack.c.b16 %v1775, %v1774
          %v1789 = vpack.c.b16 %v1777, %v1776
          %v1790 = vpack.c.b16 %v1779, %v1778
          %v1791 = vpack.c.b16 %v1781, %v1780
          %v1792 = vpack.c.b16 %v1783, %v1782
          %v1793 = vpack.c.b16 %v1785, %v1784
          %1802 = vmatprep.subr.bf16.mxu0 0
          %1803 = vmatpush1.bf16.msra.mxu0 %v1786
          %1804 = vmatprep.subr.bf16.mxu0 0
          %1805 = vmatpush1.bf16.msra.mxu0 %v1787
          %1806 = vmatprep.subr.bf16.mxu0 0
          %1807 = vmatpush1.bf16.msra.mxu0 %v1788
          %1808 = vmatprep.subr.bf16.mxu0 0
          %1809 = vmatpush1.bf16.msra.mxu0 %v1789
          %1810 = vmatprep.subr.bf16.mxu0 0
          %1811 = vmatpush1.bf16.msra.mxu0 %v1790
          %1812 = vmatprep.subr.bf16.mxu0 0
          %1813 = vmatpush1.bf16.msra.mxu0 %v1791
          %1814 = vmatprep.subr.bf16.mxu0 0
          %1815 = vmatpush1.bf16.msra.mxu0 %v1792
          %1816 = vmatprep.subr.bf16.mxu0 0
          %1817 = vmatpush1.bf16.msra.mxu0 %v1793
          %1818 = vmatprep.subr.bf16.mxu0 0
          %1819 = vmatpush1.bf16.msra.mxu0 0
          %1820 = vmatprep.subr.bf16.mxu0 0
          %1821 = vmatpush1.bf16.msra.mxu0 0
          %1822 = vmatprep.subr.bf16.mxu0 0
          %1823 = vmatpush1.bf16.msra.mxu0 0
          %1824 = vmatprep.subr.bf16.mxu0 0
          %1825 = vmatpush1.bf16.msra.mxu0 0
          %1826 = vmatprep.subr.bf16.mxu0 0
          %1827 = vmatpush1.bf16.msra.mxu0 0
          %1828 = vmatprep.subr.bf16.mxu0 0
          %1829 = vmatpush1.bf16.msra.mxu0 0
          %1830 = vmatprep.subr.bf16.mxu0 0
          %1831 = vmatpush1.bf16.msra.mxu0 0
          %1832 = vmatprep.subr.bf16.mxu0 0
          %1833 = vmatpush1.bf16.msra.mxu0 0
          %1834 = vmatprep.mubr.bf16.mxu0 0
          %1835 = vmatmul.mubr.bf16.gmra.mrb[0].mxu0 %v1729
          %v1836 = vpop.f32.mrb[0].mxu0
          %v1837 = vadd.f32 %v1752, %v1836
          %v1838 = vpop.f32.mrb[0].mxu0
          %v1839 = vpop.f32.mrb[0].mxu0
          %v1840 = vadd.f32 %v1752, %v1839
          %v1841 = vpop.f32.mrb[0].mxu0
          %1842 = vmatprep.mubr.bf16.mxu0 0
          %1843 = vmatmul.mubr.bf16.gmra.mrb[0].mxu0 %v1730
          %v1844 = vpop.f32.mrb[0].mxu0
          %v1845 = vadd.f32 %v1752, %v1844
          %v1846 = vpop.f32.mrb[0].mxu0
          %v1847 = vpop.f32.mrb[0].mxu0
          %v1848 = vadd.f32 %v1752, %v1847
          %v1849 = vpop.f32.mrb[0].mxu0
          %1850 = vdwg.mxu0
          %v1851 = vmul.f32 %v1837, 0.001
          %v1852 = vmul.f32 %v1840, 0.001
          %v1853 = vmul.f32 %v1845, 0.001
          %v1854 = vmul.f32 %v1848, 0.001
          %v1855 = vpack.c.bf16 %v1852, %v1851
          %v1856 = vpack.c.bf16 %v1854, %v1853
          %1857 = vst [vmem:[#allocation4] sm:$0xff] %v1855
          %1858 = vst [vmem:[#allocation4 + $0x8] sm:$0xff] %v1856
        $region112: #{tpu_custom_call.1} parent=79 // pred_fallthru
          _
        %s1859 = smul.u32 %s45, 32
        %s1860 = sshra.s32 %s1859, 4
        %s1861 = sand.u32 %s1859, 15
        %s1862 = smul.addr %s1860, 8
        %s1863 = scalar_lea.vmem [#allocation4], %s1862
        %v1864 = vld [vmem:[%s1863] sm:$0xff]
        %v1865 = vld [vmem:[%s1863 + $0x8] sm:$0xff]
        %v1866 = vld [vmem:[#allocation2] sm:$0xff]
        %v1867 = vld [vmem:[#allocation2 + $0x8] sm:$0xff]
        %v1868 = vld [vmem:[#allocation2 + $0x10] sm:$0xff]
        %v1869 = vld [vmem:[#allocation2 + $0x18] sm:$0xff]
        %v1870 = vld [vmem:[#allocation2 + $0x20] sm:$0xff]
        %v1871 = vld [vmem:[#allocation2 + $0x28] sm:$0xff]
        %v1872 = vld [vmem:[#allocation2 + $0x30] sm:$0xff]
        %v1873 = vld [vmem:[#allocation2 + $0x38] sm:$0xff]
        %v1874 = vld [vmem:[#allocation3] sm:$0x1]
        %v1876 = vlaneseq
        %v1877 = vshrl.u32 %v1876, 7
        %v1878 = vsub.s32 0, %v1877
        %v1879 = vrot.slane %v1874, %v1878
        %1881 = vmatprep.subr.bf16.mxu0 0
        %1882 = vmatpush1.bf16.xpose.msra.mxu0 %v1866
        %1883 = vmatprep.subr.bf16.mxu0 0
        %1884 = vmatpush1.bf16.xpose.msra.mxu0 %v1867
        %1885 = vmatprep.subr.bf16.mxu0 0
        %1886 = vmatpush1.bf16.xpose.msra.mxu0 %v1868
        %1887 = vmatprep.subr.bf16.mxu0 0
        %1888 = vmatpush1.bf16.xpose.msra.mxu0 %v1869
        %1889 = vmatprep.subr.bf16.mxu0 0
        %1890 = vmatpush1.bf16.xpose.msra.mxu0 %v1870
        %1891 = vmatprep.subr.bf16.mxu0 0
        %1892 = vmatpush1.bf16.xpose.msra.mxu0 %v1871
        %1893 = vmatprep.subr.bf16.mxu0 0
        %1894 = vmatpush1.bf16.xpose.msra.mxu0 %v1872
        %1895 = vmatprep.subr.bf16.mxu0 0
        %1896 = vmatpush1.bf16.xpose.msra.mxu0 %v1873
        %1897 = vmatprep.subr.bf16.mxu0 0
        %1898 = vmatpush1.bf16.xpose.msra.mxu0 0
        %1899 = vmatprep.subr.bf16.mxu0 0
        %1900 = vmatpush1.bf16.xpose.msra.mxu0 0
        %1901 = vmatprep.subr.bf16.mxu0 0
        %1902 = vmatpush1.bf16.xpose.msra.mxu0 0
        %1903 = vmatprep.subr.bf16.mxu0 0
        %1904 = vmatpush1.bf16.xpose.msra.mxu0 0
        %1905 = vmatprep.subr.bf16.mxu0 0
        %1906 = vmatpush1.bf16.xpose.msra.mxu0 0
        %1907 = vmatprep.subr.bf16.mxu0 0
        %1908 = vmatpush1.bf16.xpose.msra.mxu0 0
        %1909 = vmatprep.subr.bf16.mxu0 0
        %1910 = vmatpush1.bf16.xpose.msra.mxu0 0
        %1911 = vmatprep.subr.bf16.mxu0 0
        %1912 = vmatpush1.bf16.xpose.msra.mxu0 0
        %1913 = vmatprep.mubr.bf16.mxu0 0
        %1914 = vmatmul.mubr.bf16.gmra.mrb[0].mxu0 %v1864
        %v1915 = vpop.f32.mrb[0].mxu0
        %v1916 = vadd.f32 %v1879, %v1915
        %v1917 = vpop.f32.mrb[0].mxu0
        %v1918 = vpop.f32.mrb[0].mxu0
        %v1919 = vadd.f32 %v1879, %v1918
        %v1920 = vpop.f32.mrb[0].mxu0
        %1921 = vmatprep.mubr.bf16.mxu0 0
        %1922 = vmatmul.mubr.bf16.gmra.mrb[0].mxu0 %v1865
        %v1923 = vpop.f32.mrb[0].mxu0
        %v1924 = vadd.f32 %v1879, %v1923
        %v1925 = vpop.f32.mrb[0].mxu0
        %v1926 = vpop.f32.mrb[0].mxu0
        %v1927 = vadd.f32 %v1879, %v1926
        %v1928 = vpop.f32.mrb[0].mxu0
        %1929 = vdwg.mxu0
        %v1930 = vld [vmem:[%s742] sm:$0xff]
        %v1931 = vld [vmem:[%s742 + $0x8] sm:$0xff]
        %v1932 = vld [vmem:[%s742 + $0x10] sm:$0xff]
        %v1933 = vld [vmem:[%s742 + $0x18] sm:$0xff]
        %v1934 = vld [vmem:[%s752] sm:$0xff]
        %v1935 = vld [vmem:[%s752 + $0x8] sm:$0xff]
        %v1936 = vld [vmem:[%s752 + $0x10] sm:$0xff]
        %v1937 = vld [vmem:[%s752 + $0x18] sm:$0xff]
        %1938 = vmax.xlane.f32.xlu0 %v1916
        %v1939 = vpop.xlane.xlu0 %1938
        %1940 = vmax.xlane.f32.xlu0 %v1919
        %v1941 = vpop.xlane.xlu0 %1940
        %1942 = vmax.xlane.f32.xlu0 %v1924
        %v1943 = vpop.xlane.xlu0 %1942
        %1944 = vmax.xlane.f32.xlu0 %v1927
        %v1945 = vpop.xlane.xlu0 %1944
        %v1946 = vsub.f32 %v1916, %v1939
        %v1947 = vsub.f32 %v1919, %v1941
        %v1948 = vsub.f32 %v1924, %v1943
        %v1949 = vsub.f32 %v1927, %v1945
        %v1950 = vmul.f32 %v1946, 1.442695
        %v1951 = vpow.pop %v1950
        %v1952 = vmul.f32 %v1947, 1.442695
        %v1953 = vpow.pop %v1952
        %v1954 = vmul.f32 %v1948, 1.442695
        %v1955 = vpow.pop %v1954
        %v1956 = vmul.f32 %v1949, 1.442695
        %v1957 = vpow.pop %v1956
        %1958 = vadd.xlane.f32.xlu0 %v1951
        %v1959 = vpop.xlane.xlu0 %1958
        %1960 = vadd.xlane.f32.xlu0 %v1953
        %v1961 = vpop.xlane.xlu0 %1960
        %1962 = vadd.xlane.f32.xlu0 %v1955
        %v1963 = vpop.xlane.xlu0 %1962
        %1964 = vadd.xlane.f32.xlu0 %v1957
        %v1965 = vpop.xlane.xlu0 %1964
        %v1966 = vlog2.pop %v1959
        %v1967 = vmul.f32 %v1966, 0.6931472
        %v1968 = vlog2.pop %v1961
        %v1969 = vmul.f32 %v1968, 0.6931472
        %v1970 = vlog2.pop %v1963
        %v1971 = vmul.f32 %v1970, 0.6931472
        %v1972 = vlog2.pop %v1965
        %v1973 = vmul.f32 %v1972, 0.6931472
        %v1974 = vadd.f32 %v1939, %v1967
        %v1975 = vadd.f32 %v1941, %v1969
        %v1976 = vadd.f32 %v1943, %v1971
        %v1977 = vadd.f32 %v1945, %v1973
        %v1978 = vsub.f32 %v1916, %v1974
        %v1979 = vsub.f32 %v1919, %v1975
        %v1980 = vsub.f32 %v1924, %v1976
        %v1981 = vsub.f32 %v1927, %v1977
        %v1982 = vadd.f32 %v1978, %v1934
        %v1983 = vadd.f32 %v1979, %v1935
        %v1984 = vadd.f32 %v1980, %v1936
        %v1985 = vadd.f32 %v1981, %v1937
        %1986 = vst [vmem:[%s723] sm:$0xff] %v1982
        %1987 = vst [vmem:[%s723 + $0x8] sm:$0xff] %v1983
        %1988 = vst [vmem:[%s723 + $0x10] sm:$0xff] %v1984
        %1989 = vst [vmem:[%s723 + $0x18] sm:$0xff] %v1985
        %v1990 = vmul.f32 %v1951, %v1930
        %v1991 = vmul.f32 %v1953, %v1931
        %v1992 = vmul.f32 %v1955, %v1932
        %v1993 = vmul.f32 %v1957, %v1933
        %v1994 = vld [vmem:[%s619] sm:$0x1]
        %v1995 = vsub.f32 1.0, %v1994
        %v1997 = vlaneseq
        %v1998 = vshrl.u32 %v1997, 7
        %v1999 = vsub.s32 0, %v1998
        %v2000 = vrot.slane %v1995, %v1999
        %v2002 = vmul.f32 %v1990, %v2000
        %v2003 = vmul.f32 %v1991, %v2000
        %v2004 = vmul.f32 %v1992, %v2000
        %v2005 = vmul.f32 %v1993, %v2000
        %2006 = vadd.xlane.f32.xlu0 %v2002
        %v2007 = vpop.xlane.xlu0 %2006
        %2008 = vadd.xlane.f32.xlu0 %v2003
        %v2009 = vpop.xlane.xlu0 %2008
        %2010 = vadd.xlane.f32.xlu0 %v2004
        %v2011 = vpop.xlane.xlu0 %2010
        %2012 = vadd.xlane.f32.xlu0 %v2005
        %v2013 = vpop.xlane.xlu0 %2012
        %v2014 = vrcp.pop %v2007
        %v2015 = vrcp.pop %v2009
        %v2016 = vrcp.pop %v2011
        %v2017 = vrcp.pop %v2013
        %v2018 = vmul.f32 %v2002, %v2014
        %v2019 = vmul.f32 %v2003, %v2015
        %v2020 = vmul.f32 %v2004, %v2016
        %v2021 = vmul.f32 %v2005, %v2017
        %2022 = vst [vmem:[%s716] sm:$0xff] %v2018
        %2023 = vst [vmem:[%s716 + $0x8] sm:$0xff] %v2019
        %2024 = vst [vmem:[%s716 + $0x10] sm:$0xff] %v2020
        %2025 = vst [vmem:[%s716 + $0x18] sm:$0xff] %v2021
        %s2026 = sand.u32 %s406, 1
        %s2027 = scalar_lea.sflag [#allocation7], %s2026
        %s2028 = sand.u32 %s406, 1
        %s2029 = smul.addr %s2028, 32
        %s2030 = scalar_lea.vmem [#allocation17], %s2029
        %s2031 = sand.u32 %s434, 1
        %s2032 = scalar_lea.sflag [#allocation19], %s2031
        %s2033 = sand.u32 %s434, 1
        %s2034 = smul.addr %s2033, 32
        %s2035 = scalar_lea.vmem [#allocation18], %s2034
        // Predicated region
        $region113: #{tpu_custom_call.1} parent=79 // pred_check
          %p2036 = pneg %p416
        $region114: #{tpu_custom_call.1} parent=79 // pred_check_branch
          %2038 = sbr.rel (%p2036) target = $region116
        $region115: #{tpu_custom_call.1} parent=79 // pred_region
          %s2039 = smul.u32 4, %s45
          %s2041 = ssub.s32 512, 512
          %2042 = vsyncadd %s2027, %s2041
          %s2043 = smul.addr %s44, 4
          %s2044 = sadd.s32 %s2039, %s2043
          %s2045 = smul.addr %s2044, 128
          %s2046 = scalar_lea.hbm %s15, %s2045
          %s2047 = sshll.u32 %s2030, 4
          %s2048 = int_to_ptr.vmem [resolvable:$true] %s2047
          %2053 = dma.vmem_to_hbm [thread:$0]  %s2048, 512, %s2046, %s2027, 128, 128, 8
        $region116: #{tpu_custom_call.1} parent=79 // pred_fallthru
          _
        // Predicated region
        $region117: #{tpu_custom_call.1} parent=79 // pred_check
          %p2054 = pneg %p444
        $region118: #{tpu_custom_call.1} parent=79 // pred_check_branch
          %2056 = sbr.rel (%p2054) target = $region120
        $region119: #{tpu_custom_call.1} parent=79 // pred_region
          %s2057 = smul.u32 4, %s45
          %s2059 = ssub.s32 512, 512
          %2060 = vsyncadd %s2032, %s2059
          %s2061 = smul.addr %s44, 4
          %s2062 = sadd.s32 %s2057, %s2061
          %s2063 = smul.addr %s2062, 128
          %s2064 = scalar_lea.hbm %s16, %s2063
          %s2065 = sshll.u32 %s2035, 4
          %s2066 = int_to_ptr.vmem [resolvable:$true] %s2065
          %2071 = dma.vmem_to_hbm [thread:$0]  %s2066, 512, %s2064, %s2032, 128, 128, 8
        $region120: #{tpu_custom_call.1} parent=79 // pred_fallthru
          _
      $region80: #{tpu_custom_call.1} parent=5 // pred_fallthru
        _
      %p2072 = scmp.le.s32.totalorder 2, %s35
      // Predicated region
      $region121: #{tpu_custom_call.1} parent=5 // pred_check
        %p2073 = pneg %p2072
      $region122: #{tpu_custom_call.1} parent=5 // pred_check_branch
        %2075 = sbr.rel (%p2073) target = $region124
      $region123: #{tpu_custom_call.1} parent=5 // pred_region
        %s2076 = ssub.s32 %s35, 2
        // Predicated region
        $region125: #{tpu_custom_call.1} parent=123 // pred_check
          %p2077 = pneg %p422
        $region126: #{tpu_custom_call.1} parent=123 // pred_check_branch
          %2079 = sbr.rel (%p2077) target = $region128
        $region127: #{tpu_custom_call.1} parent=123 // pred_region
          %s2080 = sand.u32 %s407, 1
          %s2081 = scalar_lea.sflag [#allocation7], %s2080
          %s2082 = sand.u32 %s407, 1
          %s2083 = smul.addr %s2082, 32
          %s2084 = scalar_lea.vmem [#allocation17], %s2083
          %2085 = dma.done %s2081, 512
        $region128: #{tpu_custom_call.1} parent=123 // pred_fallthru
          _
        // Predicated region
        $region129: #{tpu_custom_call.1} parent=123 // pred_check
          %p2086 = pneg %p450
        $region130: #{tpu_custom_call.1} parent=123 // pred_check_branch
          %2088 = sbr.rel (%p2086) target = $region132
        $region131: #{tpu_custom_call.1} parent=123 // pred_region
          %s2089 = sand.u32 %s435, 1
          %s2090 = scalar_lea.sflag [#allocation19], %s2089
          %s2091 = sand.u32 %s435, 1
          %s2092 = smul.addr %s2091, 32
          %s2093 = scalar_lea.vmem [#allocation18], %s2092
          %2094 = dma.done %s2090, 512
        $region132: #{tpu_custom_call.1} parent=123 // pred_fallthru
          _
      $region124: #{tpu_custom_call.1} parent=5 // pred_fallthru
        _
    $region6: #{tpu_custom_call.1} parent=1 // loop_footer
      %s39 = sadd.s32 1, %s35
    $region7: #{tpu_custom_call.1} parent=1 // loop_footer_branch
      %34 = sbr.rel target = $region3
    $region8: #{tpu_custom_call.1} parent=1 // loop_exit
      _
    %2095 = vsyncpa [#allocation6], 1
    %s2096 = scalar_lea.sflag [#allocation6], 1
    %2097 = vsyncpa %s2096, 1
    %2098 = vsyncpa [#allocation9], 1
    %2099 = vsyncpa [#allocation12], 1
    %2100 = vsyncpa [#allocation15], 1
    %2101 = vsyncpa [#allocation7], 1
    %s2102 = scalar_lea.sflag [#allocation7], 1
    %2103 = vsyncpa %s2102, 1
    %2104 = vsyncpa [#allocation19], 1
    %s2105 = scalar_lea.sflag [#allocation19], 1
    %2106 = vsyncpa %s2105, 1

</llo_original>
